<compile_context>
chip_gen: v7x
topology: tpu7x:2x2x1
jax: 0.10.0
libtpu: 0.0.40
codegen_flags: <defaults>
</compile_context>

<pallas_src>
import functools
import math

import jax
import jax.numpy as jnp
from jax.experimental import pallas as pl
from jax.experimental.pallas import tpu as pltpu

# Constants implied by the reference model (standard tanh-GELU / LayerNorm eps).
MIA_EPSILON = 1e-5
MIA_GELU_MAGIC_FACTOR = 0.5
MIA_GELU_MAGIC_SUMMAND = 0.044715
_GELU_SQRT_2_OVER_PI = math.sqrt(2.0 / math.pi)


# ----------------------------- in-kernel helpers -----------------------------
def _layernorm(x, scale, shift):
    # Mean / biased variance over the embedding axis (var unbiased=False),
    # exactly as MiaNormalizationLayer.  rsqrt -> EUP slot.
    mean = jnp.mean(x, axis=-1, keepdims=True)
    var = jnp.mean((x - mean) ** 2, axis=-1, keepdims=True)
    xn = (x - mean) * jax.lax.rsqrt(var + MIA_EPSILON)
    return scale * xn + shift


def _mia_gelu(x):
    return MIA_GELU_MAGIC_FACTOR * x * (
        1.0 + jnp.tanh(_GELU_SQRT_2_OVER_PI * (x + MIA_GELU_MAGIC_SUMMAND * x ** 3))
    )


# ----------------------------- decoder block kernel --------------------------
def decoder_block_kernel(
    x_ref,
    ln1_s_ref, ln1_b_ref,
    wqkv_ref, bqkv_ref,        # (3H, D, hd) bf16 , (3H, 1, hd) f32
    wo_ref, bo_ref,            # (H, hd, D) bf16 , (1, D) f32
    ln2_s_ref, ln2_b_ref,
    w1_ref, b1_ref, w2_ref, b2_ref,
    o_ref,
    *, num_heads,
):
    x = x_ref[0]                                 # (T, D) f32
    T, D = x.shape
    H = num_heads
    hd = D // H

    # --- LN1 + fused head-batched QKV projection (bf16 operands, f32 accum) ---
    h = _layernorm(x, ln1_s_ref[...], ln1_b_ref[...])
    hb = jnp.broadcast_to(h.astype(jnp.bfloat16), (3 * H, T, D))
    qkv = jnp.einsum("ntd,ndk->ntk", hb, wqkv_ref[...],
                     preferred_element_type=jnp.float32) + bqkv_ref[...]
    q = qkv[:H].astype(jnp.bfloat16)             # (H, T, hd)
    k = qkv[H:2 * H].astype(jnp.bfloat16)        # (H, T, hd)
    v = qkv[2 * H:].astype(jnp.bfloat16)         # (H, T, hd)

    # --- causal multi-head attention: all heads in single batched matmuls ---
    # TODO(synk): for context lengths >> 128, tile queries/keys with a
    # flash-style online softmax instead of materializing the (H, T, T) scores.
    s = jnp.einsum("hqd,hkd->hqk", q, k,
                   preferred_element_type=jnp.float32)            # (H, T, T)
    s = s * (1.0 / math.sqrt(hd))
    row = jax.lax.broadcasted_iota(jnp.int32, (H, T, T), 1)
    col = jax.lax.broadcasted_iota(jnp.int32, (H, T, T), 2)
    s = jnp.where(row >= col, s, -1e30)
    s = s - jnp.max(s, axis=-1, keepdims=True)
    e = jnp.exp(s)
    p = e * pl.reciprocal(jnp.sum(e, axis=-1, keepdims=True), approx=True)
    ctx = jnp.einsum("hqk,hkd->hqd", p.astype(jnp.bfloat16), v,
                     preferred_element_type=jnp.float32)          # (H, T, hd)

    # --- output projection: per-head (hd, D) weight slabs, summed over heads ---
    attn = jnp.einsum("hqd,hde->hqe", ctx.astype(jnp.bfloat16), wo_ref[...],
                      preferred_element_type=jnp.float32)         # (H, T, D)
    attn = jnp.sum(attn, axis=0) + bo_ref[...]
    # TODO(synk): dropout layers are identity here (inference / rate 0).
    x = x + attn

    # --- LN2 + feed-forward (GELU), bf16 MXU operands, f32 elementwise ---
    h2 = _layernorm(x, ln2_s_ref[...], ln2_b_ref[...])
    f = jnp.dot(h2.astype(jnp.bfloat16), w1_ref[...],
                preferred_element_type=jnp.float32) + b1_ref[...]
    f = _mia_gelu(f)
    f = jnp.dot(f.astype(jnp.bfloat16), w2_ref[...],
                preferred_element_type=jnp.float32) + b2_ref[...]
    o_ref[0] = x + f


def decoder_block(x, p, num_heads):
    B, T, D = x.shape
    H = num_heads
    hd = D // H

    # Head-major weight restructuring + bf16 cast: pure layout plumbing done
    # once outside the kernel.  Wq/Wk/Wv (D, D) -> (H, D, hd), stacked into a
    # single fused (3H, D, hd) QKV operand; Wo (D, D) -> (H, hd, D).
    def w_to_heads(w):
        return w.reshape(D, H, hd).transpose(1, 0, 2)

    def b_to_heads(b):
        return b.reshape(H, 1, hd)

    wqkv = jnp.concatenate(
        [w_to_heads(p["wq"]), w_to_heads(p["wk"]), w_to_heads(p["wv"])],
        axis=0).astype(jnp.bfloat16)                       # (3H, D, hd)
    bqkv = jnp.concatenate(
        [b_to_heads(p["bq"]), b_to_heads(p["bk"]), b_to_heads(p["bv"])],
        axis=0)                                            # (3H, 1, hd) f32
    wo = p["wo"].reshape(H, hd, D).astype(jnp.bfloat16)    # (H, hd, D)

    params = [
        p["ln1_s"], p["ln1_b"],
        wqkv, bqkv,
        wo, p["bo"],
        p["ln2_s"], p["ln2_b"],
        p["w1"].astype(jnp.bfloat16), p["b1"],
        p["w2"].astype(jnp.bfloat16), p["b2"],
    ]
    # Weights use a constant index_map so they stay resident across the batch
    # grid.  TODO(synk): at large D, pass weights via memory_space=pl.ANY with
    # a one-time copy (avoid double-buffered weight VMEM) and fold the layer
    # loop into one pallas_call / cross-call prefetch to hide weight HBM DMA.
    in_specs = [pl.BlockSpec((1, T, D), lambda b: (b, 0, 0))] + [
        pl.BlockSpec(w.shape, lambda b, nd=w.ndim: (0,) * nd) for w in params
    ]
    return pl.pallas_call(
        functools.partial(decoder_block_kernel, num_heads=num_heads),
        out_shape=jax.ShapeDtypeStruct((B, T, D), jnp.float32),
        grid_spec=pltpu.PrefetchScalarGridSpec(
            num_scalar_prefetch=0,
            grid=(B,),
            in_specs=in_specs,
            out_specs=pl.BlockSpec((1, T, D), lambda b: (b, 0, 0)),
        ),
        compiler_params=pltpu.CompilerParams(
            dimension_semantics=("parallel",),
            vmem_limit_bytes=64 * 1024 * 1024),
    )(x, *params)


# ------------------------ final LN + output projection ------------------------
def _pick_tile(n, candidates):
    for c in candidates:
        if n % c == 0:
            return c
    return n


def final_proj_kernel(x_ref, ln_s_ref, ln_b_ref, wout_ref, o_ref):
    # LayerNorm is recomputed per vocab tile; it is negligible next to the
    # (rows, D) x (D, tv) matmul and keeps everything fused in one kernel.
    h = _layernorm(x_ref[...], ln_s_ref[...], ln_b_ref[...])
    o_ref[...] = jnp.dot(h.astype(jnp.bfloat16), wout_ref[...],
                         preferred_element_type=jnp.float32)


def final_projection(x, ln_s, ln_b, w_out):
    B, T, D = x.shape
    V = w_out.shape[1]
    rows = B * T
    xf = x.reshape(rows, D)
    w_bf16 = w_out.astype(jnp.bfloat16)
    tr = _pick_tile(rows, (512, 256, 128))            # row tile
    tv = _pick_tile(V, (2048, 1024, 512, 256, 128))   # lane-dense vocab tile
    out = pl.pallas_call(
        final_proj_kernel,
        out_shape=jax.ShapeDtypeStruct((rows, V), jnp.float32),
        grid_spec=pltpu.PrefetchScalarGridSpec(
            num_scalar_prefetch=0,
            grid=(rows // tr, V // tv),
            in_specs=[
                pl.BlockSpec((tr, D), lambda i, j: (i, 0)),
                pl.BlockSpec(ln_s.shape, lambda i, j: (0, 0)),
                pl.BlockSpec(ln_b.shape, lambda i, j: (0, 0)),
                pl.BlockSpec((D, tv), lambda i, j: (0, j)),
            ],
            out_specs=pl.BlockSpec((tr, tv), lambda i, j: (i, j)),
        ),
        compiler_params=pltpu.CompilerParams(
            dimension_semantics=("parallel", "parallel"),
            vmem_limit_bytes=64 * 1024 * 1024),
    )(xf, ln_s, ln_b, w_bf16)
    return out.reshape(B, T, V)


# ------------------------------- parameter init -------------------------------
def init_params(key, cfg):
    D = cfg["mia_emb_dim"]
    V = cfg["mia_vocab_size"]
    C = cfg["mia_context_length"]
    L = cfg["mia_total_decoder_layers"]

    def normal(k, shape, scale=0.02):
        return (scale * jax.random.normal(k, shape)).astype(jnp.float32)

    keys = jax.random.split(key, 3 + 8 * L)
    params = {
        "tok_emb": normal(keys[0], (V, D)),
        "pos_emb": normal(keys[1], (C, D)),
        "w_out": normal(keys[2], (D, V)),
        "final_ln_s": jnp.ones((1, D), jnp.float32),
        "final_ln_b": jnp.zeros((1, D), jnp.float32),
        "blocks": [],
    }
    for layer in range(L):
        k = keys[3 + 8 * layer: 3 + 8 * (layer + 1)]
        blk = {
            "ln1_s": jnp.ones((1, D), jnp.float32),
            "ln1_b": jnp.zeros((1, D), jnp.float32),
            "wq": normal(k[0], (D, D)), "bq": jnp.zeros((1, D), jnp.float32),
            "wk": normal(k[1], (D, D)), "bk": jnp.zeros((1, D), jnp.float32),
            "wv": normal(k[2], (D, D)), "bv": jnp.zeros((1, D), jnp.float32),
            "wo": normal(k[3], (D, D)), "bo": jnp.zeros((1, D), jnp.float32),
            "ln2_s": jnp.ones((1, D), jnp.float32),
            "ln2_b": jnp.zeros((1, D), jnp.float32),
            "w1": normal(k[4], (D, 4 * D)), "b1": jnp.zeros((1, 4 * D), jnp.float32),
            "w2": normal(k[5], (4 * D, D)), "b2": jnp.zeros((1, D), jnp.float32),
        }
        params["blocks"].append(blk)
    return params


# --------------------------------- full model ---------------------------------
def mia_base_model_forward(input_idx, params, cfg):
    B, T = input_idx.shape
    # Embedding lookups are gather glue (plain JAX); math happens in kernels.
    tok = jnp.take(params["tok_emb"], input_idx, axis=0)         # (B, T, D)
    pos = params["pos_emb"][:T]                                  # (T, D)
    x = tok + pos[None, :, :]
    # dropout_layer: identity in inference mode.
    for blk in params["blocks"]:
        x = decoder_block(x, blk, cfg["mia_total_attention_heads"])
    logits = final_projection(x, params["final_ln_s"],
                              params["final_ln_b"], params["w_out"])
    return logits


if __name__ == "__main__":
    cfg = {
        "mia_vocab_size": 64,
        "mia_emb_dim": 32,
        "mia_context_length": 8,
        "mia_total_attention_heads": 4,
        "mia_total_decoder_layers": 2,
        "mia_dropout_rate": 0.0,
        "mia_qkv_bias": True,
    }
    key = jax.random.PRNGKey(0)
    k_param, k_idx = jax.random.split(key)
    params = init_params(k_param, cfg)

    B, T = 2, 8
    input_idx = jax.random.randint(k_idx, (B, T), 0, cfg["mia_vocab_size"],
                                   dtype=jnp.int32)

    logits = mia_base_model_forward(input_idx, params, cfg)
    logits = jax.block_until_ready(logits)
    assert logits.shape == (B, T, cfg["mia_vocab_size"])
    assert jnp.all(jnp.isfinite(logits))
    print("KERNEL_OK")
</pallas_src>

<mosaic_0001>
module attributes {stable_mosaic.version = 11 : i64} {
  func.func @decoder_block_kernel(%arg0: i32, %arg1: memref<1x8x32xf32, #tpu.memory_space<vmem>>, %arg2: memref<1x32xf32, #tpu.memory_space<vmem>>, %arg3: memref<1x32xf32, #tpu.memory_space<vmem>>, %arg4: memref<12x32x8xbf16, #tpu.memory_space<vmem>>, %arg5: memref<12x1x8xf32, #tpu.memory_space<vmem>>, %arg6: memref<4x8x32xbf16, #tpu.memory_space<vmem>>, %arg7: memref<1x32xf32, #tpu.memory_space<vmem>>, %arg8: memref<1x32xf32, #tpu.memory_space<vmem>>, %arg9: memref<1x32xf32, #tpu.memory_space<vmem>>, %arg10: memref<32x128xbf16, #tpu.memory_space<vmem>>, %arg11: memref<1x128xf32, #tpu.memory_space<vmem>>, %arg12: memref<128x32xbf16, #tpu.memory_space<vmem>>, %arg13: memref<1x32xf32, #tpu.memory_space<vmem>>, %arg14: memref<1x8x32xf32, #tpu.memory_space<vmem>>) attributes {dimension_semantics = [#tpu.dimension_semantics<parallel>], iteration_bounds = array<i64: 2>, scalar_prefetch = 0 : i64, scratch_operands = 0 : i64, tpu.core_type = #tpu.core_type<tc>, window_params = [{transform_indices = @transform_0, window_bounds = array<i64: 1, 8, 32>}, {pipeline_mode = #tpu.pipeline_mode<synchronous>, transform_indices = @transform_1, window_bounds = array<i64: 1, 32>}, {pipeline_mode = #tpu.pipeline_mode<synchronous>, transform_indices = @transform_2, window_bounds = array<i64: 1, 32>}, {pipeline_mode = #tpu.pipeline_mode<synchronous>, transform_indices = @transform_3, window_bounds = array<i64: 12, 32, 8>}, {pipeline_mode = #tpu.pipeline_mode<synchronous>, transform_indices = @transform_4, window_bounds = array<i64: 12, 1, 8>}, {pipeline_mode = #tpu.pipeline_mode<synchronous>, transform_indices = @transform_5, window_bounds = array<i64: 4, 8, 32>}, {pipeline_mode = #tpu.pipeline_mode<synchronous>, transform_indices = @transform_6, window_bounds = array<i64: 1, 32>}, {pipeline_mode = #tpu.pipeline_mode<synchronous>, transform_indices = @transform_7, window_bounds = array<i64: 1, 32>}, {pipeline_mode = #tpu.pipeline_mode<synchronous>, transform_indices = @transform_8, window_bounds = array<i64: 1, 32>}, {pipeline_mode = #tpu.pipeline_mode<synchronous>, transform_indices = @transform_9, window_bounds = array<i64: 32, 128>}, {pipeline_mode = #tpu.pipeline_mode<synchronous>, transform_indices = @transform_10, window_bounds = array<i64: 1, 128>}, {pipeline_mode = #tpu.pipeline_mode<synchronous>, transform_indices = @transform_11, window_bounds = array<i64: 128, 32>}, {pipeline_mode = #tpu.pipeline_mode<synchronous>, transform_indices = @transform_12, window_bounds = array<i64: 1, 32>}, {transform_indices = @transform_13, window_bounds = array<i64: 1, 8, 32>}]} {
    %c0 = arith.constant 0 : index
    %c0_0 = arith.constant 0 : index
    %c0_1 = arith.constant 0 : index
    %0 = vector.load %arg1[%c0, %c0_0, %c0_1] : memref<1x8x32xf32, #tpu.memory_space<vmem>>, vector<1x8x32xf32>
    %1 = vector.shape_cast %0 : vector<1x8x32xf32> to vector<8x32xf32>
    %c0_2 = arith.constant 0 : index
    %c0_3 = arith.constant 0 : index
    %2 = vector.load %arg2[%c0_2, %c0_3] : memref<1x32xf32, #tpu.memory_space<vmem>>, vector<1x32xf32>
    %c0_4 = arith.constant 0 : index
    %c0_5 = arith.constant 0 : index
    %3 = vector.load %arg3[%c0_4, %c0_5] : memref<1x32xf32, #tpu.memory_space<vmem>>, vector<1x32xf32>
    %cst = arith.constant dense<0.000000e+00> : vector<8xf32>
    %4 = vector.multi_reduction <add>, %1, %cst [1] : vector<8x32xf32> to vector<8xf32>
    %5 = vector.shape_cast %4 : vector<8xf32> to vector<8x1xf32>
    %cst_6 = arith.constant 3.200000e+01 : f32
    %6 = vector.broadcast %cst_6 : f32 to vector<8x1xf32>
    %7 = arith.divf %5, %6 : vector<8x1xf32>
    %8 = vector.broadcast %7 : vector<8x1xf32> to vector<8x32xf32>
    %9 = arith.subf %1, %8 : vector<8x32xf32>
    %10 = arith.mulf %9, %9 : vector<8x32xf32>
    %cst_7 = arith.constant dense<0.000000e+00> : vector<8xf32>
    %11 = vector.multi_reduction <add>, %10, %cst_7 [1] : vector<8x32xf32> to vector<8xf32>
    %12 = vector.shape_cast %11 : vector<8xf32> to vector<8x1xf32>
    %cst_8 = arith.constant 3.200000e+01 : f32
    %13 = vector.broadcast %cst_8 : f32 to vector<8x1xf32>
    %14 = arith.divf %12, %13 : vector<8x1xf32>
    %15 = vector.broadcast %7 : vector<8x1xf32> to vector<8x32xf32>
    %16 = arith.subf %1, %15 : vector<8x32xf32>
    %cst_9 = arith.constant 9.99999974E-6 : f32
    %17 = vector.broadcast %cst_9 : f32 to vector<8x1xf32>
    %18 = arith.addf %14, %17 : vector<8x1xf32>
    %19 = math.rsqrt %18 : vector<8x1xf32>
    %20 = vector.broadcast %19 : vector<8x1xf32> to vector<8x32xf32>
    %21 = arith.mulf %16, %20 : vector<8x32xf32>
    %22 = vector.broadcast %2 : vector<1x32xf32> to vector<8x32xf32>
    %23 = arith.mulf %22, %21 : vector<8x32xf32>
    %24 = vector.broadcast %3 : vector<1x32xf32> to vector<8x32xf32>
    %25 = arith.addf %23, %24 : vector<8x32xf32>
    %26 = arith.truncf %25 : vector<8x32xf32> to vector<8x32xbf16>
    %27 = vector.shape_cast %26 : vector<8x32xbf16> to vector<1x8x32xbf16>
    %28 = vector.broadcast %27 : vector<1x8x32xbf16> to vector<12x8x32xbf16>
    %c0_10 = arith.constant 0 : index
    %c0_11 = arith.constant 0 : index
    %c0_12 = arith.constant 0 : index
    %29 = vector.load %arg4[%c0_10, %c0_11, %c0_12] : memref<12x32x8xbf16, #tpu.memory_space<vmem>>, vector<12x32x8xbf16>
    "tpu.trace_start"() <{level = 10 : i32, message = "ntd,ndk->ntk"}> : () -> ()
    %cst_13 = arith.constant dense<0.000000e+00> : vector<12x8x8xf32>
    %30 = tpu.matmul %28, %29, %cst_13 {dimension_numbers = #tpu.dot_dimension_numbers<[2], [1], [1], [2], [0, 0, 0, 1, 1, 2], [0], [0]>} : vector<12x8x32xbf16>, vector<12x32x8xbf16>, vector<12x8x8xf32> -> vector<12x8x8xf32>
    "tpu.trace_stop"() : () -> ()
    %c0_14 = arith.constant 0 : index
    %c0_15 = arith.constant 0 : index
    %c0_16 = arith.constant 0 : index
    %31 = vector.load %arg5[%c0_14, %c0_15, %c0_16] : memref<12x1x8xf32, #tpu.memory_space<vmem>>, vector<12x1x8xf32>
    %32 = vector.broadcast %31 : vector<12x1x8xf32> to vector<12x8x8xf32>
    %33 = arith.addf %30, %32 : vector<12x8x8xf32>
    %34 = vector.extract_strided_slice %33 {offsets = [0, 0, 0], sizes = [4, 8, 8], strides = [1, 1, 1]} : vector<12x8x8xf32> to vector<4x8x8xf32>
    %35 = arith.truncf %34 : vector<4x8x8xf32> to vector<4x8x8xbf16>
    %36 = vector.extract_strided_slice %33 {offsets = [4, 0, 0], sizes = [4, 8, 8], strides = [1, 1, 1]} : vector<12x8x8xf32> to vector<4x8x8xf32>
    %37 = arith.truncf %36 : vector<4x8x8xf32> to vector<4x8x8xbf16>
    %38 = vector.extract_strided_slice %33 {offsets = [8, 0, 0], sizes = [4, 8, 8], strides = [1, 1, 1]} : vector<12x8x8xf32> to vector<4x8x8xf32>
    %39 = arith.truncf %38 : vector<4x8x8xf32> to vector<4x8x8xbf16>
    "tpu.trace_start"() <{level = 10 : i32, message = "hqd,hkd->hqk"}> : () -> ()
    %cst_17 = arith.constant dense<0.000000e+00> : vector<4x8x8xf32>
    %40 = tpu.matmul %35, %37, %cst_17 {dimension_numbers = #tpu.dot_dimension_numbers<[2], [2], [1], [1], [0, 0, 0, 1, 1, 1], [0], [0]>} : vector<4x8x8xbf16>, vector<4x8x8xbf16>, vector<4x8x8xf32> -> vector<4x8x8xf32>
    "tpu.trace_stop"() : () -> ()
    %cst_18 = arith.constant 0.353553385 : f32
    %41 = vector.broadcast %cst_18 : f32 to vector<4x8x8xf32>
    %42 = arith.mulf %40, %41 : vector<4x8x8xf32>
    %43 = tpu.iota {dimensions = array<i32: 1>} : vector<4x8x8xi32>
    %44 = tpu.iota {dimensions = array<i32: 2>} : vector<4x8x8xi32>
    %45 = arith.cmpi sge, %43, %44 : vector<4x8x8xi32>
    %cst_19 = arith.constant -1.000000e+30 : f32
    %46 = vector.broadcast %cst_19 : f32 to vector<4x8x8xf32>
    %47 = arith.select %45, %42, %46 : vector<4x8x8xi1>, vector<4x8x8xf32>
    %cst_20 = arith.constant dense<0xFF800000> : vector<4x8xf32>
    %48 = vector.multi_reduction <maximumf>, %47, %cst_20 [2] : vector<4x8x8xf32> to vector<4x8xf32>
    %49 = vector.shape_cast %48 : vector<4x8xf32> to vector<4x8x1xf32>
    %50 = vector.broadcast %49 : vector<4x8x1xf32> to vector<4x8x8xf32>
    %51 = arith.subf %47, %50 : vector<4x8x8xf32>
    %52 = math.exp %51 : vector<4x8x8xf32>
    %cst_21 = arith.constant dense<0.000000e+00> : vector<4x8xf32>
    %53 = vector.multi_reduction <add>, %52, %cst_21 [2] : vector<4x8x8xf32> to vector<4x8xf32>
    %54 = vector.shape_cast %53 : vector<4x8xf32> to vector<4x8x1xf32>
    %55 = tpu.reciprocal %54 {approx = true} : vector<4x8x1xf32> -> vector<4x8x1xf32>
    %56 = vector.broadcast %55 : vector<4x8x1xf32> to vector<4x8x8xf32>
    %57 = arith.mulf %52, %56 : vector<4x8x8xf32>
    %58 = arith.truncf %57 : vector<4x8x8xf32> to vector<4x8x8xbf16>
    "tpu.trace_start"() <{level = 10 : i32, message = "hqk,hkd->hqd"}> : () -> ()
    %cst_22 = arith.constant dense<0.000000e+00> : vector<4x8x8xf32>
    %59 = tpu.matmul %58, %39, %cst_22 {dimension_numbers = #tpu.dot_dimension_numbers<[2], [1], [1], [2], [0, 0, 0, 1, 1, 2], [0], [0]>} : vector<4x8x8xbf16>, vector<4x8x8xbf16>, vector<4x8x8xf32> -> vector<4x8x8xf32>
    "tpu.trace_stop"() : () -> ()
    %60 = arith.truncf %59 : vector<4x8x8xf32> to vector<4x8x8xbf16>
    %c0_23 = arith.constant 0 : index
    %c0_24 = arith.constant 0 : index
    %c0_25 = arith.constant 0 : index
    %61 = vector.load %arg6[%c0_23, %c0_24, %c0_25] : memref<4x8x32xbf16, #tpu.memory_space<vmem>>, vector<4x8x32xbf16>
    "tpu.trace_start"() <{level = 10 : i32, message = "hqd,hde->hqe"}> : () -> ()
    %cst_26 = arith.constant dense<0.000000e+00> : vector<4x8x32xf32>
    %62 = tpu.matmul %60, %61, %cst_26 {dimension_numbers = #tpu.dot_dimension_numbers<[2], [1], [1], [2], [0, 0, 0, 1, 1, 2], [0], [0]>} : vector<4x8x8xbf16>, vector<4x8x32xbf16>, vector<4x8x32xf32> -> vector<4x8x32xf32>
    "tpu.trace_stop"() : () -> ()
    %cst_27 = arith.constant dense<0.000000e+00> : vector<8x32xf32>
    %63 = vector.multi_reduction <add>, %62, %cst_27 [0] : vector<4x8x32xf32> to vector<8x32xf32>
    %c0_28 = arith.constant 0 : index
    %c0_29 = arith.constant 0 : index
    %64 = vector.load %arg7[%c0_28, %c0_29] : memref<1x32xf32, #tpu.memory_space<vmem>>, vector<1x32xf32>
    %65 = vector.broadcast %64 : vector<1x32xf32> to vector<8x32xf32>
    %66 = arith.addf %63, %65 : vector<8x32xf32>
    %67 = arith.addf %1, %66 : vector<8x32xf32>
    %c0_30 = arith.constant 0 : index
    %c0_31 = arith.constant 0 : index
    %68 = vector.load %arg8[%c0_30, %c0_31] : memref<1x32xf32, #tpu.memory_space<vmem>>, vector<1x32xf32>
    %c0_32 = arith.constant 0 : index
    %c0_33 = arith.constant 0 : index
    %69 = vector.load %arg9[%c0_32, %c0_33] : memref<1x32xf32, #tpu.memory_space<vmem>>, vector<1x32xf32>
    %cst_34 = arith.constant dense<0.000000e+00> : vector<8xf32>
    %70 = vector.multi_reduction <add>, %67, %cst_34 [1] : vector<8x32xf32> to vector<8xf32>
    %71 = vector.shape_cast %70 : vector<8xf32> to vector<8x1xf32>
    %cst_35 = arith.constant 3.200000e+01 : f32
    %72 = vector.broadcast %cst_35 : f32 to vector<8x1xf32>
    %73 = arith.divf %71, %72 : vector<8x1xf32>
    %74 = vector.broadcast %73 : vector<8x1xf32> to vector<8x32xf32>
    %75 = arith.subf %67, %74 : vector<8x32xf32>
    %76 = arith.mulf %75, %75 : vector<8x32xf32>
    %cst_36 = arith.constant dense<0.000000e+00> : vector<8xf32>
    %77 = vector.multi_reduction <add>, %76, %cst_36 [1] : vector<8x32xf32> to vector<8xf32>
    %78 = vector.shape_cast %77 : vector<8xf32> to vector<8x1xf32>
    %cst_37 = arith.constant 3.200000e+01 : f32
    %79 = vector.broadcast %cst_37 : f32 to vector<8x1xf32>
    %80 = arith.divf %78, %79 : vector<8x1xf32>
    %81 = vector.broadcast %73 : vector<8x1xf32> to vector<8x32xf32>
    %82 = arith.subf %67, %81 : vector<8x32xf32>
    %cst_38 = arith.constant 9.99999974E-6 : f32
    %83 = vector.broadcast %cst_38 : f32 to vector<8x1xf32>
    %84 = arith.addf %80, %83 : vector<8x1xf32>
    %85 = math.rsqrt %84 : vector<8x1xf32>
    %86 = vector.broadcast %85 : vector<8x1xf32> to vector<8x32xf32>
    %87 = arith.mulf %82, %86 : vector<8x32xf32>
    %88 = vector.broadcast %68 : vector<1x32xf32> to vector<8x32xf32>
    %89 = arith.mulf %88, %87 : vector<8x32xf32>
    %90 = vector.broadcast %69 : vector<1x32xf32> to vector<8x32xf32>
    %91 = arith.addf %89, %90 : vector<8x32xf32>
    %92 = arith.truncf %91 : vector<8x32xf32> to vector<8x32xbf16>
    %c0_39 = arith.constant 0 : index
    %c0_40 = arith.constant 0 : index
    %93 = vector.load %arg10[%c0_39, %c0_40] : memref<32x128xbf16, #tpu.memory_space<vmem>>, vector<32x128xbf16>
    %cst_41 = arith.constant dense<0.000000e+00> : vector<8x128xf32>
    %94 = tpu.matmul %92, %93, %cst_41 {dimension_numbers = #tpu.dot_dimension_numbers<[1], [0], [0], [1], [0, 0, 1, 1], [], []>} : vector<8x32xbf16>, vector<32x128xbf16>, vector<8x128xf32> -> vector<8x128xf32>
    %c0_42 = arith.constant 0 : index
    %c0_43 = arith.constant 0 : index
    %95 = vector.load %arg11[%c0_42, %c0_43] : memref<1x128xf32, #tpu.memory_space<vmem>>, vector<1x128xf32>
    %96 = vector.broadcast %95 : vector<1x128xf32> to vector<8x128xf32>
    %97 = arith.addf %94, %96 : vector<8x128xf32>
    %cst_44 = arith.constant 5.000000e-01 : f32
    %98 = vector.broadcast %cst_44 : f32 to vector<8x128xf32>
    %99 = arith.mulf %98, %97 : vector<8x128xf32>
    %100 = arith.mulf %97, %97 : vector<8x128xf32>
    %101 = arith.mulf %97, %100 : vector<8x128xf32>
    %cst_45 = arith.constant 4.471500e-02 : f32
    %102 = vector.broadcast %cst_45 : f32 to vector<8x128xf32>
    %103 = arith.mulf %102, %101 : vector<8x128xf32>
    %104 = arith.addf %97, %103 : vector<8x128xf32>
    %cst_46 = arith.constant 0.797884583 : f32
    %105 = vector.broadcast %cst_46 : f32 to vector<8x128xf32>
    %106 = arith.mulf %105, %104 : vector<8x128xf32>
    %107 = math.tanh %106 : vector<8x128xf32>
    %cst_47 = arith.constant 1.000000e+00 : f32
    %108 = vector.broadcast %cst_47 : f32 to vector<8x128xf32>
    %109 = arith.addf %108, %107 : vector<8x128xf32>
    %110 = arith.mulf %99, %109 : vector<8x128xf32>
    %111 = arith.truncf %110 : vector<8x128xf32> to vector<8x128xbf16>
    %c0_48 = arith.constant 0 : index
    %c0_49 = arith.constant 0 : index
    %112 = vector.load %arg12[%c0_48, %c0_49] : memref<128x32xbf16, #tpu.memory_space<vmem>>, vector<128x32xbf16>
    %cst_50 = arith.constant dense<0.000000e+00> : vector<8x32xf32>
    %113 = tpu.matmul %111, %112, %cst_50 {dimension_numbers = #tpu.dot_dimension_numbers<[1], [0], [0], [1], [0, 0, 1, 1], [], []>} : vector<8x128xbf16>, vector<128x32xbf16>, vector<8x32xf32> -> vector<8x32xf32>
    %c0_51 = arith.constant 0 : index
    %c0_52 = arith.constant 0 : index
    %114 = vector.load %arg13[%c0_51, %c0_52] : memref<1x32xf32, #tpu.memory_space<vmem>>, vector<1x32xf32>
    %115 = vector.broadcast %114 : vector<1x32xf32> to vector<8x32xf32>
    %116 = arith.addf %113, %115 : vector<8x32xf32>
    %117 = arith.addf %67, %116 : vector<8x32xf32>
    %c0_53 = arith.constant 0 : index
    %c0_54 = arith.constant 0 : index
    %c0_55 = arith.constant 0 : index
    %118 = vector.load %arg14[%c0_53, %c0_54, %c0_55] : memref<1x8x32xf32, #tpu.memory_space<vmem>>, vector<1x8x32xf32>
    %119 = vector.shape_cast %118 : vector<1x8x32xf32> to vector<8x32xf32>
    %120 = vector.shape_cast %117 : vector<8x32xf32> to vector<1x8x32xf32>
    tpu.vector_store %arg14[%c0_53, %c0_54, %c0_55], %120 {strides = array<i32>} : memref<1x8x32xf32, #tpu.memory_space<vmem>>, vector<1x8x32xf32>,
    return
  }
  func.func @transform_0(%arg0: i32) -> (i32, i32, i32) {
    %c0_i32 = arith.constant 0 : i32
    %c0_i32_0 = arith.constant 0 : i32
    %c0_i32_1 = arith.constant 0 : i32
    return %arg0, %c0_i32, %c0_i32_0 : i32, i32, i32
  }
  func.func @transform_1(%arg0: i32) -> (i32, i32) {
    %c0_i32 = arith.constant 0 : i32
    %c0_i32_0 = arith.constant 0 : i32
    %c0_i32_1 = arith.constant 0 : i32
    return %c0_i32, %c0_i32_0 : i32, i32
  }
  func.func @transform_2(%arg0: i32) -> (i32, i32) {
    %c0_i32 = arith.constant 0 : i32
    %c0_i32_0 = arith.constant 0 : i32
    %c0_i32_1 = arith.constant 0 : i32
    return %c0_i32, %c0_i32_0 : i32, i32
  }
  func.func @transform_3(%arg0: i32) -> (i32, i32, i32) {
    %c0_i32 = arith.constant 0 : i32
    %c0_i32_0 = arith.constant 0 : i32
    %c0_i32_1 = arith.constant 0 : i32
    %c0_i32_2 = arith.constant 0 : i32
    return %c0_i32, %c0_i32_0, %c0_i32_1 : i32, i32, i32
  }
  func.func @transform_4(%arg0: i32) -> (i32, i32, i32) {
    %c0_i32 = arith.constant 0 : i32
    %c0_i32_0 = arith.constant 0 : i32
    %c0_i32_1 = arith.constant 0 : i32
    %c0_i32_2 = arith.constant 0 : i32
    return %c0_i32, %c0_i32_0, %c0_i32_1 : i32, i32, i32
  }
  func.func @transform_5(%arg0: i32) -> (i32, i32, i32) {
    %c0_i32 = arith.constant 0 : i32
    %c0_i32_0 = arith.constant 0 : i32
    %c0_i32_1 = arith.constant 0 : i32
    %c0_i32_2 = arith.constant 0 : i32
    return %c0_i32, %c0_i32_0, %c0_i32_1 : i32, i32, i32
  }
  func.func @transform_6(%arg0: i32) -> (i32, i32) {
    %c0_i32 = arith.constant 0 : i32
    %c0_i32_0 = arith.constant 0 : i32
    %c0_i32_1 = arith.constant 0 : i32
    return %c0_i32, %c0_i32_0 : i32, i32
  }
  func.func @transform_7(%arg0: i32) -> (i32, i32) {
    %c0_i32 = arith.constant 0 : i32
    %c0_i32_0 = arith.constant 0 : i32
    %c0_i32_1 = arith.constant 0 : i32
    return %c0_i32, %c0_i32_0 : i32, i32
  }
  func.func @transform_8(%arg0: i32) -> (i32, i32) {
    %c0_i32 = arith.constant 0 : i32
    %c0_i32_0 = arith.constant 0 : i32
    %c0_i32_1 = arith.constant 0 : i32
    return %c0_i32, %c0_i32_0 : i32, i32
  }
  func.func @transform_9(%arg0: i32) -> (i32, i32) {
    %c0_i32 = arith.constant 0 : i32
    %c0_i32_0 = arith.constant 0 : i32
    %c0_i32_1 = arith.constant 0 : i32
    return %c0_i32, %c0_i32_0 : i32, i32
  }
  func.func @transform_10(%arg0: i32) -> (i32, i32) {
    %c0_i32 = arith.constant 0 : i32
    %c0_i32_0 = arith.constant 0 : i32
    %c0_i32_1 = arith.constant 0 : i32
    return %c0_i32, %c0_i32_0 : i32, i32
  }
  func.func @transform_11(%arg0: i32) -> (i32, i32) {
    %c0_i32 = arith.constant 0 : i32
    %c0_i32_0 = arith.constant 0 : i32
    %c0_i32_1 = arith.constant 0 : i32
    return %c0_i32, %c0_i32_0 : i32, i32
  }
  func.func @transform_12(%arg0: i32) -> (i32, i32) {
    %c0_i32 = arith.constant 0 : i32
    %c0_i32_0 = arith.constant 0 : i32
    %c0_i32_1 = arith.constant 0 : i32
    return %c0_i32, %c0_i32_0 : i32, i32
  }
  func.func @transform_13(%arg0: i32) -> (i32, i32, i32) {
    %c0_i32 = arith.constant 0 : i32
    %c0_i32_0 = arith.constant 0 : i32
    %c0_i32_1 = arith.constant 0 : i32
    return %arg0, %c0_i32, %c0_i32_0 : i32, i32, i32
  }
}

</mosaic_0001>

<llo_original>
// kernel: tpu_custom_call.1
$region0: #{tpu_custom_call.1}
  #allocation0 [shape = 'u32[]', space=smem, size = 0x4, offset = 0x4, fixed_abs, tag = 'smem constant byte address 0x4 - core index']
  #allocation1 [shape = 'u32[144,128]{1,0:T(1,128)}', space=vmem, size = 0x12000, scoped, tag = 'internal scratch']
  %s0 = inlined_call_operand.hbm [shape: f32[2,8,32], index: 0, kind: input, shape index: {}]
  %s1 = inlined_call_operand.hbm [shape: f32[1,32], index: 1, kind: input, shape index: {}]
  %s2 = inlined_call_operand.hbm [shape: f32[1,32], index: 2, kind: input, shape index: {}]
  %s3 = inlined_call_operand.hbm [shape: bf16[12,32,8], index: 3, kind: input, shape index: {}]
  %s4 = inlined_call_operand.hbm [shape: f32[12,1,8], index: 4, kind: input, shape index: {}]
  %s5 = inlined_call_operand.hbm [shape: bf16[4,8,32], index: 5, kind: input, shape index: {}]
  %s6 = inlined_call_operand.hbm [shape: f32[1,32], index: 6, kind: input, shape index: {}]
  %s7 = inlined_call_operand.hbm [shape: f32[1,32], index: 7, kind: input, shape index: {}]
  %s8 = inlined_call_operand.hbm [shape: f32[1,32], index: 8, kind: input, shape index: {}]
  %s9 = inlined_call_operand.hbm [shape: bf16[32,128], index: 9, kind: input, shape index: {}]
  %s10 = inlined_call_operand.hbm [shape: f32[1,128], index: 10, kind: input, shape index: {}]
  %s11 = inlined_call_operand.hbm [shape: bf16[128,32], index: 11, kind: input, shape index: {}]
  %s12 = inlined_call_operand.hbm [shape: f32[1,32], index: 12, kind: input, shape index: {}]
  %s13 = inlined_call_operand.hbm [shape: f32[2,8,32], index: 13, kind: output, shape index: {}]
  %s14 = sld [smem:[#allocation0]]
  $region137: #{tpu_custom_call.1} parent=0
    _
  %s16 = ssub.s32 1, %s14
  %s17 = scalar_select 0, %s16, %s14
  $region1: #{tpu_custom_call.1} parent=0
    #allocation2 [shape = 'u8[8192]{0}', space=vmem, size = 0x2000, scoped, tag = 'input window, operand 0']
    #allocation3 [shape = 's32[2]{0}', space=sflag, size = 0x8, scoped, tag = 'scoped memory for tpu_custom_call.1']
    #allocation4 [shape = 's32[2]{0}', space=sflag, size = 0x8, scoped, tag = 'scoped memory for tpu_custom_call.1']
    #allocation5 [shape = 'u8[512]{0}', space=vmem, size = 0x400, scoped, tag = 'input window, operand 1, single buffered']
    #allocation6 [shape = 's32[1]{0}', space=sflag, size = 0x4, scoped, tag = 'scoped memory for tpu_custom_call.1']
    #allocation7 [shape = 'u8[512]{0}', space=vmem, size = 0x400, scoped, tag = 'input window, operand 2, single buffered']
    #allocation8 [shape = 'u8[98304]{0}', space=vmem, size = 0x18000, scoped, tag = 'input window, operand 3, single buffered']
    #allocation9 [shape = 's32[1]{0}', space=sflag, size = 0x4, scoped, tag = 'scoped memory for tpu_custom_call.1']
    #allocation10 [shape = 'u8[6144]{0}', space=vmem, size = 0x1800, scoped, tag = 'input window, operand 4, single buffered']
    #allocation11 [shape = 'u8[8192]{0}', space=vmem, size = 0x2000, scoped, tag = 'input window, operand 5, single buffered']
    #allocation12 [shape = 's32[1]{0}', space=sflag, size = 0x4, scoped, tag = 'scoped memory for tpu_custom_call.1']
    #allocation13 [shape = 'u8[512]{0}', space=vmem, size = 0x400, scoped, tag = 'input window, operand 6, single buffered']
    #allocation14 [shape = 'u8[512]{0}', space=vmem, size = 0x400, scoped, tag = 'input window, operand 7, single buffered']
    #allocation15 [shape = 's32[1]{0}', space=sflag, size = 0x4, scoped, tag = 'scoped memory for tpu_custom_call.1']
    #allocation16 [shape = 'u8[512]{0}', space=vmem, size = 0x400, scoped, tag = 'input window, operand 8, single buffered']
    #allocation17 [shape = 'u8[8192]{0}', space=vmem, size = 0x2000, scoped, tag = 'input window, operand 9, single buffered']
    #allocation18 [shape = 's32[1]{0}', space=sflag, size = 0x4, scoped, tag = 'scoped memory for tpu_custom_call.1']
    #allocation19 [shape = 'u8[512]{0}', space=vmem, size = 0x400, scoped, tag = 'input window, operand 10, single buffered']
    #allocation20 [shape = 'u8[32768]{0}', space=vmem, size = 0x8000, scoped, tag = 'input window, operand 11, single buffered']
    #allocation21 [shape = 's32[1]{0}', space=sflag, size = 0x4, scoped, tag = 'scoped memory for tpu_custom_call.1']
    #allocation22 [shape = 'u8[512]{0}', space=vmem, size = 0x400, scoped, tag = 'input window, operand 12, single buffered']
    #allocation23 [shape = 'u8[8192]{0}', space=vmem, size = 0x2000, scoped, tag = 'output window, operand 0']
    %18 = vsyncpa [#allocation3], 0
    %s19 = scalar_lea.sflag [#allocation3], 1
    %20 = vsyncpa %s19, 0
    %21 = vsyncpa [#allocation6], 0
    %22 = vsyncpa [#allocation9], 0
    %23 = vsyncpa [#allocation12], 0
    %24 = vsyncpa [#allocation15], 0
    %25 = vsyncpa [#allocation18], 0
    %26 = vsyncpa [#allocation21], 0
    %27 = vsyncpa [#allocation4], 0
    %s28 = scalar_lea.sflag [#allocation4], 1
    %29 = vsyncpa %s28, 0
    loop: start=0, step=1, limit=4
    $region2: #{tpu_custom_call.1} parent=1 // loop_pre_header
      _
    $region3: #{tpu_custom_call.1} parent=1 // loop_header
      %s31 = sphi 0, %s35
      %p32 = scmp.ge.s32.totalorder %s31, 4
      %s41 = sphi 0, %s43
      %s44 = sphi 0, %s41
      %s45 = sphi 0, %s44
      %s61 = sphi 0, %s45
      %s65 = sphi 0, %s65
      %s67 = sphi 0, %s65
      %s68 = sphi 0, %s67
      %s82 = sphi 0, %s68
      %s86 = sphi 0, %s86
      %s88 = sphi 0, %s86
      %s89 = sphi 0, %s88
      %s103 = sphi 0, %s89
      %s107 = sphi 0, %s107
      %s109 = sphi 0, %s107
      %s110 = sphi 0, %s109
      %s124 = sphi 0, %s110
      %s128 = sphi 0, %s128
      %s130 = sphi 0, %s128
      %s131 = sphi 0, %s130
      %s145 = sphi 0, %s131
      %s149 = sphi 0, %s149
      %s151 = sphi 0, %s149
      %s152 = sphi 0, %s151
      %s166 = sphi 0, %s152
      %s170 = sphi 0, %s170
      %s172 = sphi 0, %s170
      %s173 = sphi 0, %s172
      %s187 = sphi 0, %s173
      %s191 = sphi 0, %s191
      %s193 = sphi 0, %s191
      %s194 = sphi 0, %s193
      %s208 = sphi 0, %s194
      %s212 = sphi 0, %s212
      %s214 = sphi 0, %s212
      %s215 = sphi 0, %s214
      %s229 = sphi 0, %s215
      %s233 = sphi 0, %s233
      %s235 = sphi 0, %s233
      %s236 = sphi 0, %s235
      %s250 = sphi 0, %s236
      %s254 = sphi 0, %s254
      %s256 = sphi 0, %s254
      %s257 = sphi 0, %s256
      %s271 = sphi 0, %s257
      %s275 = sphi 0, %s275
      %s277 = sphi 0, %s275
      %s278 = sphi 0, %s277
      %s292 = sphi 0, %s278
      %s296 = sphi 0, %s296
      %s298 = sphi 0, %s296
      %s299 = sphi 0, %s298
      %s313 = sphi 0, %s299
      %s319 = sphi 0, %s321
      %s322 = sphi 0, %s319
      %s323 = sphi 0, %s322
      %s339 = sphi 0, %s323
    $region4: #{tpu_custom_call.1} parent=1 // loop_header_branch
      %34 = sbr.rel (%p32) target = $region8
    $region5: #{tpu_custom_call.1} parent=1 // loop_body
      %s36 = ssub.s32 %s31, 1
      %s37 = ssub.s32 %s31, 2
      %s38 = sadd.s32 %s31, 1
      %s39 = ssub.s32 %s31, %s38
      %p40 = scmp.eq.s32.totalorder %s39, 0
      %s42 = sadd.s32 %s41, 1
      %s43 = scalar_select %p40, %s41, %s42
      %p46 = pneg %p40
      %p47 = scmp.eq.s32.totalorder %s31, 1
      %p48 = por %p46, %p47
      %p49 = scmp.ne.s32.totalorder %s41, %s44
      %p50 = scmp.eq.s32.totalorder %s31, 0
      %p51 = por %p49, %p50
      %p52 = scmp.ne.s32.totalorder %s41, %s44
      %p53 = scmp.eq.s32.totalorder %s36, 1
      %p54 = por %p52, %p53
      %p55 = scmp.ne.s32.totalorder %s44, %s45
      %p56 = scmp.eq.s32.totalorder %s36, 0
      %p57 = por %p55, %p56
      %p58 = scmp.ne.s32.totalorder %s44, %s45
      %p59 = scmp.eq.s32.totalorder %s37, 1
      %p60 = por %p58, %p59
      %p62 = scmp.ne.s32.totalorder %s45, %s61
      %p63 = scmp.eq.s32.totalorder %s37, 0
      %p64 = por %p62, %p63
      %s66 = sadd.s32 %s65, 1
      %p69 = scmp.eq.s32.totalorder %s31, 1
      %p70 = scmp.ne.s32.totalorder %s65, %s67
      %p71 = scmp.eq.s32.totalorder %s31, 0
      %p72 = por %p70, %p71
      %p73 = scmp.ne.s32.totalorder %s65, %s67
      %p74 = scmp.eq.s32.totalorder %s36, 1
      %p75 = por %p73, %p74
      %p76 = scmp.ne.s32.totalorder %s67, %s68
      %p77 = scmp.eq.s32.totalorder %s36, 0
      %p78 = por %p76, %p77
      %p79 = scmp.ne.s32.totalorder %s67, %s68
      %p80 = scmp.eq.s32.totalorder %s37, 1
      %p81 = por %p79, %p80
      %p83 = scmp.ne.s32.totalorder %s68, %s82
      %p84 = scmp.eq.s32.totalorder %s37, 0
      %p85 = por %p83, %p84
      %s87 = sadd.s32 %s86, 1
      %p90 = scmp.eq.s32.totalorder %s31, 1
      %p91 = scmp.ne.s32.totalorder %s86, %s88
      %p92 = scmp.eq.s32.totalorder %s31, 0
      %p93 = por %p91, %p92
      %p94 = scmp.ne.s32.totalorder %s86, %s88
      %p95 = scmp.eq.s32.totalorder %s36, 1
      %p96 = por %p94, %p95
      %p97 = scmp.ne.s32.totalorder %s88, %s89
      %p98 = scmp.eq.s32.totalorder %s36, 0
      %p99 = por %p97, %p98
      %p100 = scmp.ne.s32.totalorder %s88, %s89
      %p101 = scmp.eq.s32.totalorder %s37, 1
      %p102 = por %p100, %p101
      %p104 = scmp.ne.s32.totalorder %s89, %s103
      %p105 = scmp.eq.s32.totalorder %s37, 0
      %p106 = por %p104, %p105
      %s108 = sadd.s32 %s107, 1
      %p111 = scmp.eq.s32.totalorder %s31, 1
      %p112 = scmp.ne.s32.totalorder %s107, %s109
      %p113 = scmp.eq.s32.totalorder %s31, 0
      %p114 = por %p112, %p113
      %p115 = scmp.ne.s32.totalorder %s107, %s109
      %p116 = scmp.eq.s32.totalorder %s36, 1
      %p117 = por %p115, %p116
      %p118 = scmp.ne.s32.totalorder %s109, %s110
      %p119 = scmp.eq.s32.totalorder %s36, 0
      %p120 = por %p118, %p119
      %p121 = scmp.ne.s32.totalorder %s109, %s110
      %p122 = scmp.eq.s32.totalorder %s37, 1
      %p123 = por %p121, %p122
      %p125 = scmp.ne.s32.totalorder %s110, %s124
      %p126 = scmp.eq.s32.totalorder %s37, 0
      %p127 = por %p125, %p126
      %s129 = sadd.s32 %s128, 1
      %p132 = scmp.eq.s32.totalorder %s31, 1
      %p133 = scmp.ne.s32.totalorder %s128, %s130
      %p134 = scmp.eq.s32.totalorder %s31, 0
      %p135 = por %p133, %p134
      %p136 = scmp.ne.s32.totalorder %s128, %s130
      %p137 = scmp.eq.s32.totalorder %s36, 1
      %p138 = por %p136, %p137
      %p139 = scmp.ne.s32.totalorder %s130, %s131
      %p140 = scmp.eq.s32.totalorder %s36, 0
      %p141 = por %p139, %p140
      %p142 = scmp.ne.s32.totalorder %s130, %s131
      %p143 = scmp.eq.s32.totalorder %s37, 1
      %p144 = por %p142, %p143
      %p146 = scmp.ne.s32.totalorder %s131, %s145
      %p147 = scmp.eq.s32.totalorder %s37, 0
      %p148 = por %p146, %p147
      %s150 = sadd.s32 %s149, 1
      %p153 = scmp.eq.s32.totalorder %s31, 1
      %p154 = scmp.ne.s32.totalorder %s149, %s151
      %p155 = scmp.eq.s32.totalorder %s31, 0
      %p156 = por %p154, %p155
      %p157 = scmp.ne.s32.totalorder %s149, %s151
      %p158 = scmp.eq.s32.totalorder %s36, 1
      %p159 = por %p157, %p158
      %p160 = scmp.ne.s32.totalorder %s151, %s152
      %p161 = scmp.eq.s32.totalorder %s36, 0
      %p162 = por %p160, %p161
      %p163 = scmp.ne.s32.totalorder %s151, %s152
      %p164 = scmp.eq.s32.totalorder %s37, 1
      %p165 = por %p163, %p164
      %p167 = scmp.ne.s32.totalorder %s152, %s166
      %p168 = scmp.eq.s32.totalorder %s37, 0
      %p169 = por %p167, %p168
      %s171 = sadd.s32 %s170, 1
      %p174 = scmp.eq.s32.totalorder %s31, 1
      %p175 = scmp.ne.s32.totalorder %s170, %s172
      %p176 = scmp.eq.s32.totalorder %s31, 0
      %p177 = por %p175, %p176
      %p178 = scmp.ne.s32.totalorder %s170, %s172
      %p179 = scmp.eq.s32.totalorder %s36, 1
      %p180 = por %p178, %p179
      %p181 = scmp.ne.s32.totalorder %s172, %s173
      %p182 = scmp.eq.s32.totalorder %s36, 0
      %p183 = por %p181, %p182
      %p184 = scmp.ne.s32.totalorder %s172, %s173
      %p185 = scmp.eq.s32.totalorder %s37, 1
      %p186 = por %p184, %p185
      %p188 = scmp.ne.s32.totalorder %s173, %s187
      %p189 = scmp.eq.s32.totalorder %s37, 0
      %p190 = por %p188, %p189
      %s192 = sadd.s32 %s191, 1
      %p195 = scmp.eq.s32.totalorder %s31, 1
      %p196 = scmp.ne.s32.totalorder %s191, %s193
      %p197 = scmp.eq.s32.totalorder %s31, 0
      %p198 = por %p196, %p197
      %p199 = scmp.ne.s32.totalorder %s191, %s193
      %p200 = scmp.eq.s32.totalorder %s36, 1
      %p201 = por %p199, %p200
      %p202 = scmp.ne.s32.totalorder %s193, %s194
      %p203 = scmp.eq.s32.totalorder %s36, 0
      %p204 = por %p202, %p203
      %p205 = scmp.ne.s32.totalorder %s193, %s194
      %p206 = scmp.eq.s32.totalorder %s37, 1
      %p207 = por %p205, %p206
      %p209 = scmp.ne.s32.totalorder %s194, %s208
      %p210 = scmp.eq.s32.totalorder %s37, 0
      %p211 = por %p209, %p210
      %s213 = sadd.s32 %s212, 1
      %p216 = scmp.eq.s32.totalorder %s31, 1
      %p217 = scmp.ne.s32.totalorder %s212, %s214
      %p218 = scmp.eq.s32.totalorder %s31, 0
      %p219 = por %p217, %p218
      %p220 = scmp.ne.s32.totalorder %s212, %s214
      %p221 = scmp.eq.s32.totalorder %s36, 1
      %p222 = por %p220, %p221
      %p223 = scmp.ne.s32.totalorder %s214, %s215
      %p224 = scmp.eq.s32.totalorder %s36, 0
      %p225 = por %p223, %p224
      %p226 = scmp.ne.s32.totalorder %s214, %s215
      %p227 = scmp.eq.s32.totalorder %s37, 1
      %p228 = por %p226, %p227
      %p230 = scmp.ne.s32.totalorder %s215, %s229
      %p231 = scmp.eq.s32.totalorder %s37, 0
      %p232 = por %p230, %p231
      %s234 = sadd.s32 %s233, 1
      %p237 = scmp.eq.s32.totalorder %s31, 1
      %p238 = scmp.ne.s32.totalorder %s233, %s235
      %p239 = scmp.eq.s32.totalorder %s31, 0
      %p240 = por %p238, %p239
      %p241 = scmp.ne.s32.totalorder %s233, %s235
      %p242 = scmp.eq.s32.totalorder %s36, 1
      %p243 = por %p241, %p242
      %p244 = scmp.ne.s32.totalorder %s235, %s236
      %p245 = scmp.eq.s32.totalorder %s36, 0
      %p246 = por %p244, %p245
      %p247 = scmp.ne.s32.totalorder %s235, %s236
      %p248 = scmp.eq.s32.totalorder %s37, 1
      %p249 = por %p247, %p248
      %p251 = scmp.ne.s32.totalorder %s236, %s250
      %p252 = scmp.eq.s32.totalorder %s37, 0
      %p253 = por %p251, %p252
      %s255 = sadd.s32 %s254, 1
      %p258 = scmp.eq.s32.totalorder %s31, 1
      %p259 = scmp.ne.s32.totalorder %s254, %s256
      %p260 = scmp.eq.s32.totalorder %s31, 0
      %p261 = por %p259, %p260
      %p262 = scmp.ne.s32.totalorder %s254, %s256
      %p263 = scmp.eq.s32.totalorder %s36, 1
      %p264 = por %p262, %p263
      %p265 = scmp.ne.s32.totalorder %s256, %s257
      %p266 = scmp.eq.s32.totalorder %s36, 0
      %p267 = por %p265, %p266
      %p268 = scmp.ne.s32.totalorder %s256, %s257
      %p269 = scmp.eq.s32.totalorder %s37, 1
      %p270 = por %p268, %p269
      %p272 = scmp.ne.s32.totalorder %s257, %s271
      %p273 = scmp.eq.s32.totalorder %s37, 0
      %p274 = por %p272, %p273
      %s276 = sadd.s32 %s275, 1
      %p279 = scmp.eq.s32.totalorder %s31, 1
      %p280 = scmp.ne.s32.totalorder %s275, %s277
      %p281 = scmp.eq.s32.totalorder %s31, 0
      %p282 = por %p280, %p281
      %p283 = scmp.ne.s32.totalorder %s275, %s277
      %p284 = scmp.eq.s32.totalorder %s36, 1
      %p285 = por %p283, %p284
      %p286 = scmp.ne.s32.totalorder %s277, %s278
      %p287 = scmp.eq.s32.totalorder %s36, 0
      %p288 = por %p286, %p287
      %p289 = scmp.ne.s32.totalorder %s277, %s278
      %p290 = scmp.eq.s32.totalorder %s37, 1
      %p291 = por %p289, %p290
      %p293 = scmp.ne.s32.totalorder %s278, %s292
      %p294 = scmp.eq.s32.totalorder %s37, 0
      %p295 = por %p293, %p294
      %s297 = sadd.s32 %s296, 1
      %p300 = scmp.eq.s32.totalorder %s31, 1
      %p301 = scmp.ne.s32.totalorder %s296, %s298
      %p302 = scmp.eq.s32.totalorder %s31, 0
      %p303 = por %p301, %p302
      %p304 = scmp.ne.s32.totalorder %s296, %s298
      %p305 = scmp.eq.s32.totalorder %s36, 1
      %p306 = por %p304, %p305
      %p307 = scmp.ne.s32.totalorder %s298, %s299
      %p308 = scmp.eq.s32.totalorder %s36, 0
      %p309 = por %p307, %p308
      %p310 = scmp.ne.s32.totalorder %s298, %s299
      %p311 = scmp.eq.s32.totalorder %s37, 1
      %p312 = por %p310, %p311
      %p314 = scmp.ne.s32.totalorder %s299, %s313
      %p315 = scmp.eq.s32.totalorder %s37, 0
      %p316 = por %p314, %p315
      %s317 = ssub.s32 %s31, %s38
      %p318 = scmp.eq.s32.totalorder %s317, 0
      %s320 = sadd.s32 %s319, 1
      %s321 = scalar_select %p318, %s319, %s320
      %p324 = pneg %p318
      %p325 = scmp.eq.s32.totalorder %s31, 1
      %p326 = por %p324, %p325
      %p327 = scmp.ne.s32.totalorder %s319, %s322
      %p328 = scmp.eq.s32.totalorder %s31, 0
      %p329 = por %p327, %p328
      %p330 = scmp.ne.s32.totalorder %s319, %s322
      %p331 = scmp.eq.s32.totalorder %s36, 1
      %p332 = por %p330, %p331
      %p333 = scmp.ne.s32.totalorder %s322, %s323
      %p334 = scmp.eq.s32.totalorder %s36, 0
      %p335 = por %p333, %p334
      %p336 = scmp.ne.s32.totalorder %s322, %s323
      %p337 = scmp.eq.s32.totalorder %s37, 1
      %p338 = por %p336, %p337
      %p340 = scmp.ne.s32.totalorder %s323, %s339
      %p341 = scmp.eq.s32.totalorder %s37, 0
      %p342 = por %p340, %p341
      %p343 = scmp.le.s32.totalorder 1, %s31
      %p344 = scmp.lt.s32.totalorder %s31, 3
      %p345 = pnand %p343, %p344
      %p346 = pneg %p345
      // Predicated region
      $region9: #{tpu_custom_call.1} parent=5 // pred_check
        _
      $region10: #{tpu_custom_call.1} parent=5 // pred_check_branch
        %348 = sbr.rel (%p345) target = $region12
      $region11: #{tpu_custom_call.1} parent=5 // pred_region
        %s349 = ssub.s32 %s31, 1
        // Predicated region
        $region13: #{tpu_custom_call.1} parent=11 // pred_check
          %p350 = pneg %p78
        $region14: #{tpu_custom_call.1} parent=11 // pred_check_branch
          %352 = sbr.rel (%p350) target = $region16
        $region15: #{tpu_custom_call.1} parent=11 // pred_region
          %s354 = ssub.s32 16, 16
          %355 = vsyncadd [#allocation6], %s354
          %s357 = sshll.u32 [#allocation5], 4
          %s358 = int_to_ptr.vmem [resolvable:$true] %s357
          %360 = dma.hbm_to_vmem [thread:$0]  %s1, 16, %s358, [#allocation6]
        $region16: #{tpu_custom_call.1} parent=11 // pred_fallthru
          _
        // Predicated region
        $region17: #{tpu_custom_call.1} parent=11 // pred_check
          %p361 = pneg %p99
        $region18: #{tpu_custom_call.1} parent=11 // pred_check_branch
          %363 = sbr.rel (%p361) target = $region20
        $region19: #{tpu_custom_call.1} parent=11 // pred_region
          %s365 = ssub.s32 16, 16
          %366 = vsyncadd [#allocation6], %s365
          %s368 = sshll.u32 [#allocation7], 4
          %s369 = int_to_ptr.vmem [resolvable:$true] %s368
          %371 = dma.hbm_to_vmem [thread:$0]  %s2, 16, %s369, [#allocation6]
        $region20: #{tpu_custom_call.1} parent=11 // pred_fallthru
          _
        // Predicated region
        $region21: #{tpu_custom_call.1} parent=11 // pred_check
          %p372 = pneg %p120
        $region22: #{tpu_custom_call.1} parent=11 // pred_check_branch
          %374 = sbr.rel (%p372) target = $region24
        $region23: #{tpu_custom_call.1} parent=11 // pred_region
          %s376 = ssub.s32 3072, 3072
          %377 = vsyncadd [#allocation9], %s376
          %s378 = sshll.u32 [#allocation8], 4
          %s379 = int_to_ptr.vmem [resolvable:$true] %s378
          %384 = dma.hbm_to_vmem [thread:$0]  %s3, 3072, %s379, [#allocation9], 64, 64, 4
        $region24: #{tpu_custom_call.1} parent=11 // pred_fallthru
          _
        // Predicated region
        $region25: #{tpu_custom_call.1} parent=11 // pred_check
          %p385 = pneg %p141
        $region26: #{tpu_custom_call.1} parent=11 // pred_check_branch
          %387 = sbr.rel (%p385) target = $region28
        $region27: #{tpu_custom_call.1} parent=11 // pred_region
          %s389 = ssub.s32 192, 192
          %390 = vsyncadd [#allocation9], %s389
          %s391 = sshll.u32 [#allocation10], 4
          %s392 = int_to_ptr.vmem [resolvable:$true] %s391
          %397 = dma.hbm_to_vmem [thread:$0]  %s4, 192, %s392, [#allocation9], 16, 16, 1
        $region28: #{tpu_custom_call.1} parent=11 // pred_fallthru
          _
        // Predicated region
        $region29: #{tpu_custom_call.1} parent=11 // pred_check
          %p398 = pneg %p162
        $region30: #{tpu_custom_call.1} parent=11 // pred_check_branch
          %400 = sbr.rel (%p398) target = $region32
        $region31: #{tpu_custom_call.1} parent=11 // pred_region
          %s402 = ssub.s32 256, 256
          %403 = vsyncadd [#allocation12], %s402
          %s404 = sshll.u32 [#allocation11], 4
          %s405 = int_to_ptr.vmem [resolvable:$true] %s404
          %410 = dma.hbm_to_vmem [thread:$0]  %s5, 256, %s405, [#allocation12], 64, 64, 4
        $region32: #{tpu_custom_call.1} parent=11 // pred_fallthru
          _
        // Predicated region
        $region33: #{tpu_custom_call.1} parent=11 // pred_check
          %p411 = pneg %p183
        $region34: #{tpu_custom_call.1} parent=11 // pred_check_branch
          %413 = sbr.rel (%p411) target = $region36
        $region35: #{tpu_custom_call.1} parent=11 // pred_region
          %s415 = ssub.s32 16, 16
          %416 = vsyncadd [#allocation12], %s415
          %s418 = sshll.u32 [#allocation13], 4
          %s419 = int_to_ptr.vmem [resolvable:$true] %s418
          %421 = dma.hbm_to_vmem [thread:$0]  %s6, 16, %s419, [#allocation12]
        $region36: #{tpu_custom_call.1} parent=11 // pred_fallthru
          _
        // Predicated region
        $region37: #{tpu_custom_call.1} parent=11 // pred_check
          %p422 = pneg %p204
        $region38: #{tpu_custom_call.1} parent=11 // pred_check_branch
          %424 = sbr.rel (%p422) target = $region40
        $region39: #{tpu_custom_call.1} parent=11 // pred_region
          %s426 = ssub.s32 16, 16
          %427 = vsyncadd [#allocation15], %s426
          %s429 = sshll.u32 [#allocation14], 4
          %s430 = int_to_ptr.vmem [resolvable:$true] %s429
          %432 = dma.hbm_to_vmem [thread:$0]  %s7, 16, %s430, [#allocation15]
        $region40: #{tpu_custom_call.1} parent=11 // pred_fallthru
          _
        // Predicated region
        $region41: #{tpu_custom_call.1} parent=11 // pred_check
          %p433 = pneg %p225
        $region42: #{tpu_custom_call.1} parent=11 // pred_check_branch
          %435 = sbr.rel (%p433) target = $region44
        $region43: #{tpu_custom_call.1} parent=11 // pred_region
          %s437 = ssub.s32 16, 16
          %438 = vsyncadd [#allocation15], %s437
          %s440 = sshll.u32 [#allocation16], 4
          %s441 = int_to_ptr.vmem [resolvable:$true] %s440
          %443 = dma.hbm_to_vmem [thread:$0]  %s8, 16, %s441, [#allocation15]
        $region44: #{tpu_custom_call.1} parent=11 // pred_fallthru
          _
        // Predicated region
        $region45: #{tpu_custom_call.1} parent=11 // pred_check
          %p444 = pneg %p246
        $region46: #{tpu_custom_call.1} parent=11 // pred_check_branch
          %446 = sbr.rel (%p444) target = $region48
        $region47: #{tpu_custom_call.1} parent=11 // pred_region
          %s448 = ssub.s32 256, 256
          %449 = vsyncadd [#allocation18], %s448
          %s450 = sshll.u32 [#allocation17], 4
          %s451 = int_to_ptr.vmem [resolvable:$true] %s450
          %456 = dma.hbm_to_vmem [thread:$0]  %s9, 256, %s451, [#allocation18], 64, 64, 4
        $region48: #{tpu_custom_call.1} parent=11 // pred_fallthru
          _
        // Predicated region
        $region49: #{tpu_custom_call.1} parent=11 // pred_check
          %p457 = pneg %p267
        $region50: #{tpu_custom_call.1} parent=11 // pred_check_branch
          %459 = sbr.rel (%p457) target = $region52
        $region51: #{tpu_custom_call.1} parent=11 // pred_region
          %s461 = ssub.s32 16, 16
          %462 = vsyncadd [#allocation18], %s461
          %s464 = sshll.u32 [#allocation19], 4
          %s465 = int_to_ptr.vmem [resolvable:$true] %s464
          %467 = dma.hbm_to_vmem [thread:$0]  %s10, 16, %s465, [#allocation18]
        $region52: #{tpu_custom_call.1} parent=11 // pred_fallthru
          _
        // Predicated region
        $region53: #{tpu_custom_call.1} parent=11 // pred_check
          %p468 = pneg %p288
        $region54: #{tpu_custom_call.1} parent=11 // pred_check_branch
          %470 = sbr.rel (%p468) target = $region56
        $region55: #{tpu_custom_call.1} parent=11 // pred_region
          %s472 = ssub.s32 1024, 1024
          %473 = vsyncadd [#allocation21], %s472
          %s474 = sshll.u32 [#allocation20], 4
          %s475 = int_to_ptr.vmem [resolvable:$true] %s474
          %480 = dma.hbm_to_vmem [thread:$0]  %s11, 1024, %s475, [#allocation21], 64, 64, 4
        $region56: #{tpu_custom_call.1} parent=11 // pred_fallthru
          _
        // Predicated region
        $region57: #{tpu_custom_call.1} parent=11 // pred_check
          %p481 = pneg %p309
        $region58: #{tpu_custom_call.1} parent=11 // pred_check_branch
          %483 = sbr.rel (%p481) target = $region60
        $region59: #{tpu_custom_call.1} parent=11 // pred_region
          %s485 = ssub.s32 16, 16
          %486 = vsyncadd [#allocation21], %s485
          %s488 = sshll.u32 [#allocation22], 4
          %s489 = int_to_ptr.vmem [resolvable:$true] %s488
          %491 = dma.hbm_to_vmem [thread:$0]  %s12, 16, %s489, [#allocation21]
        $region60: #{tpu_custom_call.1} parent=11 // pred_fallthru
          _
      $region12: #{tpu_custom_call.1} parent=5 // pred_fallthru
        _
      %p492 = scmp.lt.s32.totalorder %s31, 2
      // Predicated region
      $region61: #{tpu_custom_call.1} parent=5 // pred_check
        %p493 = pneg %p492
      $region62: #{tpu_custom_call.1} parent=5 // pred_check_branch
        %495 = sbr.rel (%p493) target = $region64
      $region63: #{tpu_custom_call.1} parent=5 // pred_region
        // Predicated region
        $region65: #{tpu_custom_call.1} parent=63 // pred_check
          %p496 = pneg %p51
        $region66: #{tpu_custom_call.1} parent=63 // pred_check_branch
          %498 = sbr.rel (%p496) target = $region68
        $region67: #{tpu_custom_call.1} parent=63 // pred_region
          %s499 = sand.u32 %s41, 1
          %s500 = scalar_lea.sflag [#allocation3], %s499
          %s501 = sand.u32 %s41, 1
          %s502 = smul.addr %s501, 8
          %s503 = scalar_lea.vmem [#allocation2], %s502
          %s505 = ssub.s32 128, 128
          %506 = vsyncadd %s500, %s505
          %s507 = smul.addr %s31, 128
          %s508 = scalar_lea.hbm %s0, %s507
          %s510 = sshll.u32 %s503, 4
          %s511 = int_to_ptr.vmem [resolvable:$true] %s510
          %513 = dma.hbm_to_vmem [thread:$0]  %s508, 128, %s511, %s500
        $region68: #{tpu_custom_call.1} parent=63 // pred_fallthru
          _
      $region64: #{tpu_custom_call.1} parent=5 // pred_fallthru
        _
      %p514 = scmp.le.s32.totalorder 1, %s31
      %p515 = scmp.lt.s32.totalorder %s31, 3
      %p516 = pnand %p514, %p515
      %p517 = pneg %p516
      // Predicated region
      $region69: #{tpu_custom_call.1} parent=5 // pred_check
        _
      $region70: #{tpu_custom_call.1} parent=5 // pred_check_branch
        %519 = sbr.rel (%p516) target = $region72
      $region71: #{tpu_custom_call.1} parent=5 // pred_region
        %s520 = ssub.s32 %s31, 1
        %s521 = sand.u32 %s44, 1
        %s522 = scalar_lea.sflag [#allocation3], %s521
        %s523 = sand.u32 %s44, 1
        %s524 = smul.addr %s523, 8
        %s525 = scalar_lea.vmem [#allocation2], %s524
        // Predicated region
        $region73: #{tpu_custom_call.1} parent=71 // pred_check
          %p526 = pneg %p57
        $region74: #{tpu_custom_call.1} parent=71 // pred_check_branch
          %528 = sbr.rel (%p526) target = $region76
        $region75: #{tpu_custom_call.1} parent=71 // pred_region
          %529 = dma.done %s522, 128
        $region76: #{tpu_custom_call.1} parent=71 // pred_fallthru
          _
        // Predicated region
        $region77: #{tpu_custom_call.1} parent=71 // pred_check
          %p530 = pneg %p78
        $region78: #{tpu_custom_call.1} parent=71 // pred_check_branch
          %532 = sbr.rel (%p530) target = $region80
        $region79: #{tpu_custom_call.1} parent=71 // pred_region
          %533 = dma.done [#allocation6], 16
        $region80: #{tpu_custom_call.1} parent=71 // pred_fallthru
          _
        // Predicated region
        $region81: #{tpu_custom_call.1} parent=71 // pred_check
          %p534 = pneg %p99
        $region82: #{tpu_custom_call.1} parent=71 // pred_check_branch
          %536 = sbr.rel (%p534) target = $region84
        $region83: #{tpu_custom_call.1} parent=71 // pred_region
          %537 = dma.done [#allocation6], 16
        $region84: #{tpu_custom_call.1} parent=71 // pred_fallthru
          _
        // Predicated region
        $region85: #{tpu_custom_call.1} parent=71 // pred_check
          %p538 = pneg %p120
        $region86: #{tpu_custom_call.1} parent=71 // pred_check_branch
          %540 = sbr.rel (%p538) target = $region88
        $region87: #{tpu_custom_call.1} parent=71 // pred_region
          %541 = dma.done [#allocation9], 3072
        $region88: #{tpu_custom_call.1} parent=71 // pred_fallthru
          _
        // Predicated region
        $region89: #{tpu_custom_call.1} parent=71 // pred_check
          %p542 = pneg %p141
        $region90: #{tpu_custom_call.1} parent=71 // pred_check_branch
          %544 = sbr.rel (%p542) target = $region92
        $region91: #{tpu_custom_call.1} parent=71 // pred_region
          %545 = dma.done [#allocation9], 192
        $region92: #{tpu_custom_call.1} parent=71 // pred_fallthru
          _
        // Predicated region
        $region93: #{tpu_custom_call.1} parent=71 // pred_check
          %p546 = pneg %p162
        $region94: #{tpu_custom_call.1} parent=71 // pred_check_branch
          %548 = sbr.rel (%p546) target = $region96
        $region95: #{tpu_custom_call.1} parent=71 // pred_region
          %549 = dma.done [#allocation12], 256
        $region96: #{tpu_custom_call.1} parent=71 // pred_fallthru
          _
        // Predicated region
        $region97: #{tpu_custom_call.1} parent=71 // pred_check
          %p550 = pneg %p183
        $region98: #{tpu_custom_call.1} parent=71 // pred_check_branch
          %552 = sbr.rel (%p550) target = $region100
        $region99: #{tpu_custom_call.1} parent=71 // pred_region
          %553 = dma.done [#allocation12], 16
        $region100: #{tpu_custom_call.1} parent=71 // pred_fallthru
          _
        // Predicated region
        $region101: #{tpu_custom_call.1} parent=71 // pred_check
          %p554 = pneg %p204
        $region102: #{tpu_custom_call.1} parent=71 // pred_check_branch
          %556 = sbr.rel (%p554) target = $region104
        $region103: #{tpu_custom_call.1} parent=71 // pred_region
          %557 = dma.done [#allocation15], 16
        $region104: #{tpu_custom_call.1} parent=71 // pred_fallthru
          _
        // Predicated region
        $region105: #{tpu_custom_call.1} parent=71 // pred_check
          %p558 = pneg %p225
        $region106: #{tpu_custom_call.1} parent=71 // pred_check_branch
          %560 = sbr.rel (%p558) target = $region108
        $region107: #{tpu_custom_call.1} parent=71 // pred_region
          %561 = dma.done [#allocation15], 16
        $region108: #{tpu_custom_call.1} parent=71 // pred_fallthru
          _
        // Predicated region
        $region109: #{tpu_custom_call.1} parent=71 // pred_check
          %p562 = pneg %p246
        $region110: #{tpu_custom_call.1} parent=71 // pred_check_branch
          %564 = sbr.rel (%p562) target = $region112
        $region111: #{tpu_custom_call.1} parent=71 // pred_region
          %565 = dma.done [#allocation18], 256
        $region112: #{tpu_custom_call.1} parent=71 // pred_fallthru
          _
        // Predicated region
        $region113: #{tpu_custom_call.1} parent=71 // pred_check
          %p566 = pneg %p267
        $region114: #{tpu_custom_call.1} parent=71 // pred_check_branch
          %568 = sbr.rel (%p566) target = $region116
        $region115: #{tpu_custom_call.1} parent=71 // pred_region
          %569 = dma.done [#allocation18], 16
        $region116: #{tpu_custom_call.1} parent=71 // pred_fallthru
          _
        // Predicated region
        $region117: #{tpu_custom_call.1} parent=71 // pred_check
          %p570 = pneg %p288
        $region118: #{tpu_custom_call.1} parent=71 // pred_check_branch
          %572 = sbr.rel (%p570) target = $region120
        $region119: #{tpu_custom_call.1} parent=71 // pred_region
          %573 = dma.done [#allocation21], 1024
        $region120: #{tpu_custom_call.1} parent=71 // pred_fallthru
          _
        // Predicated region
        $region121: #{tpu_custom_call.1} parent=71 // pred_check
          %p574 = pneg %p309
        $region122: #{tpu_custom_call.1} parent=71 // pred_check_branch
          %576 = sbr.rel (%p574) target = $region124
        $region123: #{tpu_custom_call.1} parent=71 // pred_region
          %577 = dma.done [#allocation21], 16
        $region124: #{tpu_custom_call.1} parent=71 // pred_fallthru
          _
        %s578 = sand.u32 %s44, 1
        %s579 = scalar_lea.sflag [#allocation3], %s578
        %s580 = sand.u32 %s44, 1
        %s581 = smul.addr %s580, 8
        %s582 = scalar_lea.vmem [#allocation2], %s581
        %p583 = pneg %p57
        %p584 = pneg %p54
        %p585 = pneg %p78
        %p586 = pneg %p75
        %p587 = pneg %p99
        %p588 = pneg %p96
        %p589 = pneg %p120
        %p590 = pneg %p117
        %p591 = pneg %p141
        %p592 = pneg %p138
        %p593 = pneg %p162
        %p594 = pneg %p159
        %p595 = pneg %p183
        %p596 = pneg %p180
        %p597 = pneg %p204
        %p598 = pneg %p201
        %p599 = pneg %p225
        %p600 = pneg %p222
        %p601 = pneg %p246
        %p602 = pneg %p243
        %p603 = pneg %p267
        %p604 = pneg %p264
        %p605 = pneg %p288
        %p606 = pneg %p285
        %p607 = pneg %p309
        %p608 = pneg %p306
        %p609 = pneg %p335
        %p610 = pneg %p332
        %s611 = sand.u32 %s322, 1
        %s612 = scalar_lea.sflag [#allocation4], %s611
        %s613 = sand.u32 %s322, 1
        %s614 = smul.addr %s613, 8
        %s615 = scalar_lea.vmem [#allocation23], %s614
        %v617 = vld [vmem:[%s525] sm:$0xff]
        %v618 = vld [vmem:[#allocation5] sm:$0x1]
        %v619 = vld [vmem:[#allocation7] sm:$0x1]
        %vm620 = vcmask 261120
        %v621 = vsel %vm620, %v617, 0.0
        %622 = vadd.xlane.f32.xlu0 %v621
        %v623 = vpop.xlane.xlu0 %622
        %v624 = vrcp.pop 32.0
        %v625 = vmul.f32 %v623, %v624
        %v626 = vsub.f32 %v617, %v625
        %v627 = vmul.f32 %v626, %v626
        %v628 = vsel %vm620, %v627, 0.0
        %629 = vadd.xlane.f32.xlu0 %v628
        %v630 = vpop.xlane.xlu0 %629
        %v631 = vmul.f32 %v630, %v624
        %v632 = vadd.f32 %v631, 1e-05
        %v633 = vrsqrt.pop %v632
        %v634 = vmul.f32 %v626, %v633
        %v636 = vlaneseq
        %v637 = vshrl.u32 %v636, 7
        %v638 = vsub.s32 0, %v637
        %v639 = vrot.slane %v618, %v638
        %v641 = vmul.f32 %v639, %v634
        %v643 = vlaneseq
        %v644 = vshrl.u32 %v643, 7
        %v645 = vsub.s32 0, %v644
        %v646 = vrot.slane %v619, %v645
        %v648 = vadd.f32 %v641, %v646
        %v649 = vpack.c.bf16 %v648, %v648
        %v650 = vld [vmem:[#allocation8] sm:$0xf]
        %v651 = vld [vmem:[#allocation8 + $0x4] sm:$0xf]
        %v652 = vld [vmem:[#allocation8 + $0x8] sm:$0xf]
        %v653 = vld [vmem:[#allocation8 + $0xc] sm:$0xf]
        %v654 = vld [vmem:[#allocation8 + $0x10] sm:$0xf]
        %v655 = vld [vmem:[#allocation8 + $0x14] sm:$0xf]
        %v656 = vld [vmem:[#allocation8 + $0x18] sm:$0xf]
        %v657 = vld [vmem:[#allocation8 + $0x1c] sm:$0xf]
        %v658 = vld [vmem:[#allocation8 + $0x20] sm:$0xf]
        %v659 = vld [vmem:[#allocation8 + $0x24] sm:$0xf]
        %v660 = vld [vmem:[#allocation8 + $0x28] sm:$0xf]
        %v661 = vld [vmem:[#allocation8 + $0x2c] sm:$0xf]
        %v662 = vld [vmem:[#allocation8 + $0x30] sm:$0xf]
        %v663 = vld [vmem:[#allocation8 + $0x34] sm:$0xf]
        %v664 = vld [vmem:[#allocation8 + $0x38] sm:$0xf]
        %v665 = vld [vmem:[#allocation8 + $0x3c] sm:$0xf]
        %v666 = vld [vmem:[#allocation8 + $0x40] sm:$0xf]
        %v667 = vld [vmem:[#allocation8 + $0x44] sm:$0xf]
        %v668 = vld [vmem:[#allocation8 + $0x48] sm:$0xf]
        %v669 = vld [vmem:[#allocation8 + $0x4c] sm:$0xf]
        %v670 = vld [vmem:[#allocation8 + $0x50] sm:$0xf]
        %v671 = vld [vmem:[#allocation8 + $0x54] sm:$0xf]
        %v672 = vld [vmem:[#allocation8 + $0x58] sm:$0xf]
        %v673 = vld [vmem:[#allocation8 + $0x5c] sm:$0xf]
        %v674 = vld [vmem:[#allocation8 + $0x60] sm:$0xf]
        %v675 = vld [vmem:[#allocation8 + $0x64] sm:$0xf]
        %v676 = vld [vmem:[#allocation8 + $0x68] sm:$0xf]
        %v677 = vld [vmem:[#allocation8 + $0x6c] sm:$0xf]
        %v678 = vld [vmem:[#allocation8 + $0x70] sm:$0xf]
        %v679 = vld [vmem:[#allocation8 + $0x74] sm:$0xf]
        %v680 = vld [vmem:[#allocation8 + $0x78] sm:$0xf]
        %v681 = vld [vmem:[#allocation8 + $0x7c] sm:$0xf]
        %v682 = vld [vmem:[#allocation8 + $0x80] sm:$0xf]
        %v683 = vld [vmem:[#allocation8 + $0x84] sm:$0xf]
        %v684 = vld [vmem:[#allocation8 + $0x88] sm:$0xf]
        %v685 = vld [vmem:[#allocation8 + $0x8c] sm:$0xf]
        %v686 = vld [vmem:[#allocation8 + $0x90] sm:$0xf]
        %v687 = vld [vmem:[#allocation8 + $0x94] sm:$0xf]
        %v688 = vld [vmem:[#allocation8 + $0x98] sm:$0xf]
        %v689 = vld [vmem:[#allocation8 + $0x9c] sm:$0xf]
        %v690 = vld [vmem:[#allocation8 + $0xa0] sm:$0xf]
        %v691 = vld [vmem:[#allocation8 + $0xa4] sm:$0xf]
        %v692 = vld [vmem:[#allocation8 + $0xa8] sm:$0xf]
        %v693 = vld [vmem:[#allocation8 + $0xac] sm:$0xf]
        %v694 = vld [vmem:[#allocation8 + $0xb0] sm:$0xf]
        %v695 = vld [vmem:[#allocation8 + $0xb4] sm:$0xf]
        %v696 = vld [vmem:[#allocation8 + $0xb8] sm:$0xf]
        %v697 = vld [vmem:[#allocation8 + $0xbc] sm:$0xf]
        %v698 = vld [vmem:[#allocation10] sm:$0x1]
        %v699 = vld [vmem:[#allocation10 + $0x1] sm:$0x1]
        %v700 = vld [vmem:[#allocation10 + $0x2] sm:$0x1]
        %v701 = vld [vmem:[#allocation10 + $0x3] sm:$0x1]
        %v702 = vld [vmem:[#allocation10 + $0x4] sm:$0x1]
        %v703 = vld [vmem:[#allocation10 + $0x5] sm:$0x1]
        %v704 = vld [vmem:[#allocation10 + $0x6] sm:$0x1]
        %v705 = vld [vmem:[#allocation10 + $0x7] sm:$0x1]
        %v706 = vld [vmem:[#allocation10 + $0x8] sm:$0x1]
        %v707 = vld [vmem:[#allocation10 + $0x9] sm:$0x1]
        %v708 = vld [vmem:[#allocation10 + $0xa] sm:$0x1]
        %v709 = vld [vmem:[#allocation10 + $0xb] sm:$0x1]
        %v722 = vlaneseq
        %v723 = vshrl.u32 %v722, 7
        %v724 = vsub.s32 0, %v723
        %v725 = vrot.slane %v698, %v724
        %v726 = vlaneseq
        %v727 = vshrl.u32 %v726, 7
        %v728 = vsub.s32 0, %v727
        %v729 = vrot.slane %v699, %v728
        %v730 = vlaneseq
        %v731 = vshrl.u32 %v730, 7
        %v732 = vsub.s32 0, %v731
        %v733 = vrot.slane %v700, %v732
        %v734 = vlaneseq
        %v735 = vshrl.u32 %v734, 7
        %v736 = vsub.s32 0, %v735
        %v737 = vrot.slane %v701, %v736
        %v738 = vlaneseq
        %v739 = vshrl.u32 %v738, 7
        %v740 = vsub.s32 0, %v739
        %v741 = vrot.slane %v702, %v740
        %v742 = vlaneseq
        %v743 = vshrl.u32 %v742, 7
        %v744 = vsub.s32 0, %v743
        %v745 = vrot.slane %v703, %v744
        %v746 = vlaneseq
        %v747 = vshrl.u32 %v746, 7
        %v748 = vsub.s32 0, %v747
        %v749 = vrot.slane %v704, %v748
        %v750 = vlaneseq
        %v751 = vshrl.u32 %v750, 7
        %v752 = vsub.s32 0, %v751
        %v753 = vrot.slane %v705, %v752
        %v754 = vlaneseq
        %v755 = vshrl.u32 %v754, 7
        %v756 = vsub.s32 0, %v755
        %v757 = vrot.slane %v706, %v756
        %v758 = vlaneseq
        %v759 = vshrl.u32 %v758, 7
        %v760 = vsub.s32 0, %v759
        %v761 = vrot.slane %v707, %v760
        %v762 = vlaneseq
        %v763 = vshrl.u32 %v762, 7
        %v764 = vsub.s32 0, %v763
        %v765 = vrot.slane %v708, %v764
        %v766 = vlaneseq
        %v767 = vshrl.u32 %v766, 7
        %v768 = vsub.s32 0, %v767
        %v769 = vrot.slane %v709, %v768
        %v786 = vunpack.c.l.b16 %v650
        %v787 = vunpack.c.l.b16 %v651
        %v788 = vunpack.c.l.b16 %v652
        %v789 = vunpack.c.l.b16 %v653
        %v790 = vpack.c.b16 %v787, %v786
        %v791 = vpack.c.b16 %v789, %v788
        %v795 = vsel %vm620, %v649, 0
        %797 = vmatprep.subr.bf16.mxu0 0
        %798 = vmatpush1.bf16.msra.mxu0 %v790
        %799 = vmatprep.subr.bf16.mxu0 0
        %800 = vmatpush1.bf16.msra.mxu0 %v791
        %801 = vmatprep.subr.bf16.mxu0 0
        %802 = vmatpush1.bf16.msra.mxu0 0
        %803 = vmatprep.subr.bf16.mxu0 0
        %804 = vmatpush1.bf16.msra.mxu0 0
        %805 = vmatprep.subr.bf16.mxu0 0
        %806 = vmatpush1.bf16.msra.mxu0 0
        %807 = vmatprep.subr.bf16.mxu0 0
        %808 = vmatpush1.bf16.msra.mxu0 0
        %809 = vmatprep.subr.bf16.mxu0 0
        %810 = vmatpush1.bf16.msra.mxu0 0
        %811 = vmatprep.subr.bf16.mxu0 0
        %812 = vmatpush1.bf16.msra.mxu0 0
        %813 = vmatprep.subr.bf16.mxu0 0
        %814 = vmatpush1.bf16.msra.mxu0 0
        %815 = vmatprep.subr.bf16.mxu0 0
        %816 = vmatpush1.bf16.msra.mxu0 0
        %817 = vmatprep.subr.bf16.mxu0 0
        %818 = vmatpush1.bf16.msra.mxu0 0
        %819 = vmatprep.subr.bf16.mxu0 0
        %820 = vmatpush1.bf16.msra.mxu0 0
        %821 = vmatprep.subr.bf16.mxu0 0
        %822 = vmatpush1.bf16.msra.mxu0 0
        %823 = vmatprep.subr.bf16.mxu0 0
        %824 = vmatpush1.bf16.msra.mxu0 0
        %825 = vmatprep.subr.bf16.mxu0 0
        %826 = vmatpush1.bf16.msra.mxu0 0
        %827 = vmatprep.subr.bf16.mxu0 0
        %828 = vmatpush1.bf16.msra.mxu0 0
        %829 = vmatprep.mubr.bf16.mxu0 0
        %830 = vmatmul.mubr.bf16.gmra.mrb[0].mxu0 %v795
        %v831 = vpop.f32.mrb[0].mxu0
        %v832 = vadd.f32 %v725, %v831
        %v833 = vpop.f32.mrb[0].mxu0
        %v834 = vpop.f32.mrb[0].mxu0
        %v835 = vpop.f32.mrb[0].mxu0
        %836 = vdwg.mxu0
        %v841 = vunpack.c.l.b16 %v654
        %v842 = vunpack.c.l.b16 %v655
        %v843 = vunpack.c.l.b16 %v656
        %v844 = vunpack.c.l.b16 %v657
        %v845 = vpack.c.b16 %v842, %v841
        %v846 = vpack.c.b16 %v844, %v843
        %849 = vmatprep.subr.bf16.mxu0 0
        %850 = vmatpush1.bf16.msra.mxu0 %v845
        %851 = vmatprep.subr.bf16.mxu0 0
        %852 = vmatpush1.bf16.msra.mxu0 %v846
        %853 = vmatprep.subr.bf16.mxu0 0
        %854 = vmatpush1.bf16.msra.mxu0 0
        %855 = vmatprep.subr.bf16.mxu0 0
        %856 = vmatpush1.bf16.msra.mxu0 0
        %857 = vmatprep.subr.bf16.mxu0 0
        %858 = vmatpush1.bf16.msra.mxu0 0
        %859 = vmatprep.subr.bf16.mxu0 0
        %860 = vmatpush1.bf16.msra.mxu0 0
        %861 = vmatprep.subr.bf16.mxu0 0
        %862 = vmatpush1.bf16.msra.mxu0 0
        %863 = vmatprep.subr.bf16.mxu0 0
        %864 = vmatpush1.bf16.msra.mxu0 0
        %865 = vmatprep.subr.bf16.mxu0 0
        %866 = vmatpush1.bf16.msra.mxu0 0
        %867 = vmatprep.subr.bf16.mxu0 0
        %868 = vmatpush1.bf16.msra.mxu0 0
        %869 = vmatprep.subr.bf16.mxu0 0
        %870 = vmatpush1.bf16.msra.mxu0 0
        %871 = vmatprep.subr.bf16.mxu0 0
        %872 = vmatpush1.bf16.msra.mxu0 0
        %873 = vmatprep.subr.bf16.mxu0 0
        %874 = vmatpush1.bf16.msra.mxu0 0
        %875 = vmatprep.subr.bf16.mxu0 0
        %876 = vmatpush1.bf16.msra.mxu0 0
        %877 = vmatprep.subr.bf16.mxu0 0
        %878 = vmatpush1.bf16.msra.mxu0 0
        %879 = vmatprep.subr.bf16.mxu0 0
        %880 = vmatpush1.bf16.msra.mxu0 0
        %881 = vmatprep.mubr.bf16.mxu0 0
        %882 = vmatmul.mubr.bf16.gmra.mrb[0].mxu0 %v795
        %v883 = vpop.f32.mrb[0].mxu0
        %v884 = vadd.f32 %v729, %v883
        %v885 = vpop.f32.mrb[0].mxu0
        %v886 = vpop.f32.mrb[0].mxu0
        %v887 = vpop.f32.mrb[0].mxu0
        %888 = vdwg.mxu0
        %v893 = vunpack.c.l.b16 %v658
        %v894 = vunpack.c.l.b16 %v659
        %v895 = vunpack.c.l.b16 %v660
        %v896 = vunpack.c.l.b16 %v661
        %v897 = vpack.c.b16 %v894, %v893
        %v898 = vpack.c.b16 %v896, %v895
        %901 = vmatprep.subr.bf16.mxu0 0
        %902 = vmatpush1.bf16.msra.mxu0 %v897
        %903 = vmatprep.subr.bf16.mxu0 0
        %904 = vmatpush1.bf16.msra.mxu0 %v898
        %905 = vmatprep.subr.bf16.mxu0 0
        %906 = vmatpush1.bf16.msra.mxu0 0
        %907 = vmatprep.subr.bf16.mxu0 0
        %908 = vmatpush1.bf16.msra.mxu0 0
        %909 = vmatprep.subr.bf16.mxu0 0
        %910 = vmatpush1.bf16.msra.mxu0 0
        %911 = vmatprep.subr.bf16.mxu0 0
        %912 = vmatpush1.bf16.msra.mxu0 0
        %913 = vmatprep.subr.bf16.mxu0 0
        %914 = vmatpush1.bf16.msra.mxu0 0
        %915 = vmatprep.subr.bf16.mxu0 0
        %916 = vmatpush1.bf16.msra.mxu0 0
        %917 = vmatprep.subr.bf16.mxu0 0
        %918 = vmatpush1.bf16.msra.mxu0 0
        %919 = vmatprep.subr.bf16.mxu0 0
        %920 = vmatpush1.bf16.msra.mxu0 0
        %921 = vmatprep.subr.bf16.mxu0 0
        %922 = vmatpush1.bf16.msra.mxu0 0
        %923 = vmatprep.subr.bf16.mxu0 0
        %924 = vmatpush1.bf16.msra.mxu0 0
        %925 = vmatprep.subr.bf16.mxu0 0
        %926 = vmatpush1.bf16.msra.mxu0 0
        %927 = vmatprep.subr.bf16.mxu0 0
        %928 = vmatpush1.bf16.msra.mxu0 0
        %929 = vmatprep.subr.bf16.mxu0 0
        %930 = vmatpush1.bf16.msra.mxu0 0
        %931 = vmatprep.subr.bf16.mxu0 0
        %932 = vmatpush1.bf16.msra.mxu0 0
        %933 = vmatprep.mubr.bf16.mxu0 0
        %934 = vmatmul.mubr.bf16.gmra.mrb[0].mxu0 %v795
        %v935 = vpop.f32.mrb[0].mxu0
        %v936 = vadd.f32 %v733, %v935
        %v937 = vpop.f32.mrb[0].mxu0
        %v938 = vpop.f32.mrb[0].mxu0
        %v939 = vpop.f32.mrb[0].mxu0
        %940 = vdwg.mxu0
        %v945 = vunpack.c.l.b16 %v662
        %v946 = vunpack.c.l.b16 %v663
        %v947 = vunpack.c.l.b16 %v664
        %v948 = vunpack.c.l.b16 %v665
        %v949 = vpack.c.b16 %v946, %v945
        %v950 = vpack.c.b16 %v948, %v947
        %953 = vmatprep.subr.bf16.mxu0 0
        %954 = vmatpush1.bf16.msra.mxu0 %v949
        %955 = vmatprep.subr.bf16.mxu0 0
        %956 = vmatpush1.bf16.msra.mxu0 %v950
        %957 = vmatprep.subr.bf16.mxu0 0
        %958 = vmatpush1.bf16.msra.mxu0 0
        %959 = vmatprep.subr.bf16.mxu0 0
        %960 = vmatpush1.bf16.msra.mxu0 0
        %961 = vmatprep.subr.bf16.mxu0 0
        %962 = vmatpush1.bf16.msra.mxu0 0
        %963 = vmatprep.subr.bf16.mxu0 0
        %964 = vmatpush1.bf16.msra.mxu0 0
        %965 = vmatprep.subr.bf16.mxu0 0
        %966 = vmatpush1.bf16.msra.mxu0 0
        %967 = vmatprep.subr.bf16.mxu0 0
        %968 = vmatpush1.bf16.msra.mxu0 0
        %969 = vmatprep.subr.bf16.mxu0 0
        %970 = vmatpush1.bf16.msra.mxu0 0
        %971 = vmatprep.subr.bf16.mxu0 0
        %972 = vmatpush1.bf16.msra.mxu0 0
        %973 = vmatprep.subr.bf16.mxu0 0
        %974 = vmatpush1.bf16.msra.mxu0 0
        %975 = vmatprep.subr.bf16.mxu0 0
        %976 = vmatpush1.bf16.msra.mxu0 0
        %977 = vmatprep.subr.bf16.mxu0 0
        %978 = vmatpush1.bf16.msra.mxu0 0
        %979 = vmatprep.subr.bf16.mxu0 0
        %980 = vmatpush1.bf16.msra.mxu0 0
        %981 = vmatprep.subr.bf16.mxu0 0
        %982 = vmatpush1.bf16.msra.mxu0 0
        %983 = vmatprep.subr.bf16.mxu0 0
        %984 = vmatpush1.bf16.msra.mxu0 0
        %985 = vmatprep.mubr.bf16.mxu0 0
        %986 = vmatmul.mubr.bf16.gmra.mrb[0].mxu0 %v795
        %v987 = vpop.f32.mrb[0].mxu0
        %v988 = vadd.f32 %v737, %v987
        %v989 = vpop.f32.mrb[0].mxu0
        %v990 = vpop.f32.mrb[0].mxu0
        %v991 = vpop.f32.mrb[0].mxu0
        %992 = vdwg.mxu0
        %v997 = vunpack.c.l.b16 %v666
        %v998 = vunpack.c.l.b16 %v667
        %v999 = vunpack.c.l.b16 %v668
        %v1000 = vunpack.c.l.b16 %v669
        %v1001 = vpack.c.b16 %v998, %v997
        %v1002 = vpack.c.b16 %v1000, %v999
        %1005 = vmatprep.subr.bf16.mxu0 0
        %1006 = vmatpush1.bf16.msra.mxu0 %v1001
        %1007 = vmatprep.subr.bf16.mxu0 0
        %1008 = vmatpush1.bf16.msra.mxu0 %v1002
        %1009 = vmatprep.subr.bf16.mxu0 0
        %1010 = vmatpush1.bf16.msra.mxu0 0
        %1011 = vmatprep.subr.bf16.mxu0 0
        %1012 = vmatpush1.bf16.msra.mxu0 0
        %1013 = vmatprep.subr.bf16.mxu0 0
        %1014 = vmatpush1.bf16.msra.mxu0 0
        %1015 = vmatprep.subr.bf16.mxu0 0
        %1016 = vmatpush1.bf16.msra.mxu0 0
        %1017 = vmatprep.subr.bf16.mxu0 0
        %1018 = vmatpush1.bf16.msra.mxu0 0
        %1019 = vmatprep.subr.bf16.mxu0 0
        %1020 = vmatpush1.bf16.msra.mxu0 0
        %1021 = vmatprep.subr.bf16.mxu0 0
        %1022 = vmatpush1.bf16.msra.mxu0 0
        %1023 = vmatprep.subr.bf16.mxu0 0
        %1024 = vmatpush1.bf16.msra.mxu0 0
        %1025 = vmatprep.subr.bf16.mxu0 0
        %1026 = vmatpush1.bf16.msra.mxu0 0
        %1027 = vmatprep.subr.bf16.mxu0 0
        %1028 = vmatpush1.bf16.msra.mxu0 0
        %1029 = vmatprep.subr.bf16.mxu0 0
        %1030 = vmatpush1.bf16.msra.mxu0 0
        %1031 = vmatprep.subr.bf16.mxu0 0
        %1032 = vmatpush1.bf16.msra.mxu0 0
        %1033 = vmatprep.subr.bf16.mxu0 0
        %1034 = vmatpush1.bf16.msra.mxu0 0
        %1035 = vmatprep.subr.bf16.mxu0 0
        %1036 = vmatpush1.bf16.msra.mxu0 0
        %1037 = vmatprep.mubr.bf16.mxu0 0
        %1038 = vmatmul.mubr.bf16.gmra.mrb[0].mxu0 %v795
        %v1039 = vpop.f32.mrb[0].mxu0
        %v1040 = vadd.f32 %v741, %v1039
        %v1041 = vpop.f32.mrb[0].mxu0
        %v1042 = vpop.f32.mrb[0].mxu0
        %v1043 = vpop.f32.mrb[0].mxu0
        %1044 = vdwg.mxu0
        %v1049 = vunpack.c.l.b16 %v670
        %v1050 = vunpack.c.l.b16 %v671
        %v1051 = vunpack.c.l.b16 %v672
        %v1052 = vunpack.c.l.b16 %v673
        %v1053 = vpack.c.b16 %v1050, %v1049
        %v1054 = vpack.c.b16 %v1052, %v1051
        %1057 = vmatprep.subr.bf16.mxu0 0
        %1058 = vmatpush1.bf16.msra.mxu0 %v1053
        %1059 = vmatprep.subr.bf16.mxu0 0
        %1060 = vmatpush1.bf16.msra.mxu0 %v1054
        %1061 = vmatprep.subr.bf16.mxu0 0
        %1062 = vmatpush1.bf16.msra.mxu0 0
        %1063 = vmatprep.subr.bf16.mxu0 0
        %1064 = vmatpush1.bf16.msra.mxu0 0
        %1065 = vmatprep.subr.bf16.mxu0 0
        %1066 = vmatpush1.bf16.msra.mxu0 0
        %1067 = vmatprep.subr.bf16.mxu0 0
        %1068 = vmatpush1.bf16.msra.mxu0 0
        %1069 = vmatprep.subr.bf16.mxu0 0
        %1070 = vmatpush1.bf16.msra.mxu0 0
        %1071 = vmatprep.subr.bf16.mxu0 0
        %1072 = vmatpush1.bf16.msra.mxu0 0
        %1073 = vmatprep.subr.bf16.mxu0 0
        %1074 = vmatpush1.bf16.msra.mxu0 0
        %1075 = vmatprep.subr.bf16.mxu0 0
        %1076 = vmatpush1.bf16.msra.mxu0 0
        %1077 = vmatprep.subr.bf16.mxu0 0
        %1078 = vmatpush1.bf16.msra.mxu0 0
        %1079 = vmatprep.subr.bf16.mxu0 0
        %1080 = vmatpush1.bf16.msra.mxu0 0
        %1081 = vmatprep.subr.bf16.mxu0 0
        %1082 = vmatpush1.bf16.msra.mxu0 0
        %1083 = vmatprep.subr.bf16.mxu0 0
        %1084 = vmatpush1.bf16.msra.mxu0 0
        %1085 = vmatprep.subr.bf16.mxu0 0
        %1086 = vmatpush1.bf16.msra.mxu0 0
        %1087 = vmatprep.subr.bf16.mxu0 0
        %1088 = vmatpush1.bf16.msra.mxu0 0
        %1089 = vmatprep.mubr.bf16.mxu0 0
        %1090 = vmatmul.mubr.bf16.gmra.mrb[0].mxu0 %v795
        %v1091 = vpop.f32.mrb[0].mxu0
        %v1092 = vadd.f32 %v745, %v1091
        %v1093 = vpop.f32.mrb[0].mxu0
        %v1094 = vpop.f32.mrb[0].mxu0
        %v1095 = vpop.f32.mrb[0].mxu0
        %1096 = vdwg.mxu0
        %v1101 = vunpack.c.l.b16 %v674
        %v1102 = vunpack.c.l.b16 %v675
        %v1103 = vunpack.c.l.b16 %v676
        %v1104 = vunpack.c.l.b16 %v677
        %v1105 = vpack.c.b16 %v1102, %v1101
        %v1106 = vpack.c.b16 %v1104, %v1103
        %1109 = vmatprep.subr.bf16.mxu0 0
        %1110 = vmatpush1.bf16.msra.mxu0 %v1105
        %1111 = vmatprep.subr.bf16.mxu0 0
        %1112 = vmatpush1.bf16.msra.mxu0 %v1106
        %1113 = vmatprep.subr.bf16.mxu0 0
        %1114 = vmatpush1.bf16.msra.mxu0 0
        %1115 = vmatprep.subr.bf16.mxu0 0
        %1116 = vmatpush1.bf16.msra.mxu0 0
        %1117 = vmatprep.subr.bf16.mxu0 0
        %1118 = vmatpush1.bf16.msra.mxu0 0
        %1119 = vmatprep.subr.bf16.mxu0 0
        %1120 = vmatpush1.bf16.msra.mxu0 0
        %1121 = vmatprep.subr.bf16.mxu0 0
        %1122 = vmatpush1.bf16.msra.mxu0 0
        %1123 = vmatprep.subr.bf16.mxu0 0
        %1124 = vmatpush1.bf16.msra.mxu0 0
        %1125 = vmatprep.subr.bf16.mxu0 0
        %1126 = vmatpush1.bf16.msra.mxu0 0
        %1127 = vmatprep.subr.bf16.mxu0 0
        %1128 = vmatpush1.bf16.msra.mxu0 0
        %1129 = vmatprep.subr.bf16.mxu0 0
        %1130 = vmatpush1.bf16.msra.mxu0 0
        %1131 = vmatprep.subr.bf16.mxu0 0
        %1132 = vmatpush1.bf16.msra.mxu0 0
        %1133 = vmatprep.subr.bf16.mxu0 0
        %1134 = vmatpush1.bf16.msra.mxu0 0
        %1135 = vmatprep.subr.bf16.mxu0 0
        %1136 = vmatpush1.bf16.msra.mxu0 0
        %1137 = vmatprep.subr.bf16.mxu0 0
        %1138 = vmatpush1.bf16.msra.mxu0 0
        %1139 = vmatprep.subr.bf16.mxu0 0
        %1140 = vmatpush1.bf16.msra.mxu0 0
        %1141 = vmatprep.mubr.bf16.mxu0 0
        %1142 = vmatmul.mubr.bf16.gmra.mrb[0].mxu0 %v795
        %v1143 = vpop.f32.mrb[0].mxu0
        %v1144 = vadd.f32 %v749, %v1143
        %v1145 = vpop.f32.mrb[0].mxu0
        %v1146 = vpop.f32.mrb[0].mxu0
        %v1147 = vpop.f32.mrb[0].mxu0
        %1148 = vdwg.mxu0
        %v1153 = vunpack.c.l.b16 %v678
        %v1154 = vunpack.c.l.b16 %v679
        %v1155 = vunpack.c.l.b16 %v680
        %v1156 = vunpack.c.l.b16 %v681
        %v1157 = vpack.c.b16 %v1154, %v1153
        %v1158 = vpack.c.b16 %v1156, %v1155
        %1161 = vmatprep.subr.bf16.mxu0 0
        %1162 = vmatpush1.bf16.msra.mxu0 %v1157
        %1163 = vmatprep.subr.bf16.mxu0 0
        %1164 = vmatpush1.bf16.msra.mxu0 %v1158
        %1165 = vmatprep.subr.bf16.mxu0 0
        %1166 = vmatpush1.bf16.msra.mxu0 0
        %1167 = vmatprep.subr.bf16.mxu0 0
        %1168 = vmatpush1.bf16.msra.mxu0 0
        %1169 = vmatprep.subr.bf16.mxu0 0
        %1170 = vmatpush1.bf16.msra.mxu0 0
        %1171 = vmatprep.subr.bf16.mxu0 0
        %1172 = vmatpush1.bf16.msra.mxu0 0
        %1173 = vmatprep.subr.bf16.mxu0 0
        %1174 = vmatpush1.bf16.msra.mxu0 0
        %1175 = vmatprep.subr.bf16.mxu0 0
        %1176 = vmatpush1.bf16.msra.mxu0 0
        %1177 = vmatprep.subr.bf16.mxu0 0
        %1178 = vmatpush1.bf16.msra.mxu0 0
        %1179 = vmatprep.subr.bf16.mxu0 0
        %1180 = vmatpush1.bf16.msra.mxu0 0
        %1181 = vmatprep.subr.bf16.mxu0 0
        %1182 = vmatpush1.bf16.msra.mxu0 0
        %1183 = vmatprep.subr.bf16.mxu0 0
        %1184 = vmatpush1.bf16.msra.mxu0 0
        %1185 = vmatprep.subr.bf16.mxu0 0
        %1186 = vmatpush1.bf16.msra.mxu0 0
        %1187 = vmatprep.subr.bf16.mxu0 0
        %1188 = vmatpush1.bf16.msra.mxu0 0
        %1189 = vmatprep.subr.bf16.mxu0 0
        %1190 = vmatpush1.bf16.msra.mxu0 0
        %1191 = vmatprep.subr.bf16.mxu0 0
        %1192 = vmatpush1.bf16.msra.mxu0 0
        %1193 = vmatprep.mubr.bf16.mxu0 0
        %1194 = vmatmul.mubr.bf16.gmra.mrb[0].mxu0 %v795
        %v1195 = vpop.f32.mrb[0].mxu0
        %v1196 = vadd.f32 %v753, %v1195
        %v1197 = vpop.f32.mrb[0].mxu0
        %v1198 = vpop.f32.mrb[0].mxu0
        %v1199 = vpop.f32.mrb[0].mxu0
        %1200 = vdwg.mxu0
        %v1205 = vunpack.c.l.b16 %v682
        %v1206 = vunpack.c.l.b16 %v683
        %v1207 = vunpack.c.l.b16 %v684
        %v1208 = vunpack.c.l.b16 %v685
        %v1209 = vpack.c.b16 %v1206, %v1205
        %v1210 = vpack.c.b16 %v1208, %v1207
        %1213 = vmatprep.subr.bf16.mxu0 0
        %1214 = vmatpush1.bf16.msra.mxu0 %v1209
        %1215 = vmatprep.subr.bf16.mxu0 0
        %1216 = vmatpush1.bf16.msra.mxu0 %v1210
        %1217 = vmatprep.subr.bf16.mxu0 0
        %1218 = vmatpush1.bf16.msra.mxu0 0
        %1219 = vmatprep.subr.bf16.mxu0 0
        %1220 = vmatpush1.bf16.msra.mxu0 0
        %1221 = vmatprep.subr.bf16.mxu0 0
        %1222 = vmatpush1.bf16.msra.mxu0 0
        %1223 = vmatprep.subr.bf16.mxu0 0
        %1224 = vmatpush1.bf16.msra.mxu0 0
        %1225 = vmatprep.subr.bf16.mxu0 0
        %1226 = vmatpush1.bf16.msra.mxu0 0
        %1227 = vmatprep.subr.bf16.mxu0 0
        %1228 = vmatpush1.bf16.msra.mxu0 0
        %1229 = vmatprep.subr.bf16.mxu0 0
        %1230 = vmatpush1.bf16.msra.mxu0 0
        %1231 = vmatprep.subr.bf16.mxu0 0
        %1232 = vmatpush1.bf16.msra.mxu0 0
        %1233 = vmatprep.subr.bf16.mxu0 0
        %1234 = vmatpush1.bf16.msra.mxu0 0
        %1235 = vmatprep.subr.bf16.mxu0 0
        %1236 = vmatpush1.bf16.msra.mxu0 0
        %1237 = vmatprep.subr.bf16.mxu0 0
        %1238 = vmatpush1.bf16.msra.mxu0 0
        %1239 = vmatprep.subr.bf16.mxu0 0
        %1240 = vmatpush1.bf16.msra.mxu0 0
        %1241 = vmatprep.subr.bf16.mxu0 0
        %1242 = vmatpush1.bf16.msra.mxu0 0
        %1243 = vmatprep.subr.bf16.mxu0 0
        %1244 = vmatpush1.bf16.msra.mxu0 0
        %1245 = vmatprep.mubr.bf16.mxu0 0
        %1246 = vmatmul.mubr.bf16.gmra.mrb[0].mxu0 %v795
        %v1247 = vpop.f32.mrb[0].mxu0
        %v1248 = vadd.f32 %v757, %v1247
        %v1249 = vpop.f32.mrb[0].mxu0
        %v1250 = vpop.f32.mrb[0].mxu0
        %v1251 = vpop.f32.mrb[0].mxu0
        %1252 = vdwg.mxu0
        %v1257 = vunpack.c.l.b16 %v686
        %v1258 = vunpack.c.l.b16 %v687
        %v1259 = vunpack.c.l.b16 %v688
        %v1260 = vunpack.c.l.b16 %v689
        %v1261 = vpack.c.b16 %v1258, %v1257
        %v1262 = vpack.c.b16 %v1260, %v1259
        %1265 = vmatprep.subr.bf16.mxu0 0
        %1266 = vmatpush1.bf16.msra.mxu0 %v1261
        %1267 = vmatprep.subr.bf16.mxu0 0
        %1268 = vmatpush1.bf16.msra.mxu0 %v1262
        %1269 = vmatprep.subr.bf16.mxu0 0
        %1270 = vmatpush1.bf16.msra.mxu0 0
        %1271 = vmatprep.subr.bf16.mxu0 0
        %1272 = vmatpush1.bf16.msra.mxu0 0
        %1273 = vmatprep.subr.bf16.mxu0 0
        %1274 = vmatpush1.bf16.msra.mxu0 0
        %1275 = vmatprep.subr.bf16.mxu0 0
        %1276 = vmatpush1.bf16.msra.mxu0 0
        %1277 = vmatprep.subr.bf16.mxu0 0
        %1278 = vmatpush1.bf16.msra.mxu0 0
        %1279 = vmatprep.subr.bf16.mxu0 0
        %1280 = vmatpush1.bf16.msra.mxu0 0
        %1281 = vmatprep.subr.bf16.mxu0 0
        %1282 = vmatpush1.bf16.msra.mxu0 0
        %1283 = vmatprep.subr.bf16.mxu0 0
        %1284 = vmatpush1.bf16.msra.mxu0 0
        %1285 = vmatprep.subr.bf16.mxu0 0
        %1286 = vmatpush1.bf16.msra.mxu0 0
        %1287 = vmatprep.subr.bf16.mxu0 0
        %1288 = vmatpush1.bf16.msra.mxu0 0
        %1289 = vmatprep.subr.bf16.mxu0 0
        %1290 = vmatpush1.bf16.msra.mxu0 0
        %1291 = vmatprep.subr.bf16.mxu0 0
        %1292 = vmatpush1.bf16.msra.mxu0 0
        %1293 = vmatprep.subr.bf16.mxu0 0
        %1294 = vmatpush1.bf16.msra.mxu0 0
        %1295 = vmatprep.subr.bf16.mxu0 0
        %1296 = vmatpush1.bf16.msra.mxu0 0
        %1297 = vmatprep.mubr.bf16.mxu0 0
        %1298 = vmatmul.mubr.bf16.gmra.mrb[0].mxu0 %v795
        %v1299 = vpop.f32.mrb[0].mxu0
        %v1300 = vadd.f32 %v761, %v1299
        %v1301 = vpop.f32.mrb[0].mxu0
        %v1302 = vpop.f32.mrb[0].mxu0
        %v1303 = vpop.f32.mrb[0].mxu0
        %1304 = vdwg.mxu0
        %v1309 = vunpack.c.l.b16 %v690
        %v1310 = vunpack.c.l.b16 %v691
        %v1311 = vunpack.c.l.b16 %v692
        %v1312 = vunpack.c.l.b16 %v693
        %v1313 = vpack.c.b16 %v1310, %v1309
        %v1314 = vpack.c.b16 %v1312, %v1311
        %1317 = vmatprep.subr.bf16.mxu0 0
        %1318 = vmatpush1.bf16.msra.mxu0 %v1313
        %1319 = vmatprep.subr.bf16.mxu0 0
        %1320 = vmatpush1.bf16.msra.mxu0 %v1314
        %1321 = vmatprep.subr.bf16.mxu0 0
        %1322 = vmatpush1.bf16.msra.mxu0 0
        %1323 = vmatprep.subr.bf16.mxu0 0
        %1324 = vmatpush1.bf16.msra.mxu0 0
        %1325 = vmatprep.subr.bf16.mxu0 0
        %1326 = vmatpush1.bf16.msra.mxu0 0
        %1327 = vmatprep.subr.bf16.mxu0 0
        %1328 = vmatpush1.bf16.msra.mxu0 0
        %1329 = vmatprep.subr.bf16.mxu0 0
        %1330 = vmatpush1.bf16.msra.mxu0 0
        %1331 = vmatprep.subr.bf16.mxu0 0
        %1332 = vmatpush1.bf16.msra.mxu0 0
        %1333 = vmatprep.subr.bf16.mxu0 0
        %1334 = vmatpush1.bf16.msra.mxu0 0
        %1335 = vmatprep.subr.bf16.mxu0 0
        %1336 = vmatpush1.bf16.msra.mxu0 0
        %1337 = vmatprep.subr.bf16.mxu0 0
        %1338 = vmatpush1.bf16.msra.mxu0 0
        %1339 = vmatprep.subr.bf16.mxu0 0
        %1340 = vmatpush1.bf16.msra.mxu0 0
        %1341 = vmatprep.subr.bf16.mxu0 0
        %1342 = vmatpush1.bf16.msra.mxu0 0
        %1343 = vmatprep.subr.bf16.mxu0 0
        %1344 = vmatpush1.bf16.msra.mxu0 0
        %1345 = vmatprep.subr.bf16.mxu0 0
        %1346 = vmatpush1.bf16.msra.mxu0 0
        %1347 = vmatprep.subr.bf16.mxu0 0
        %1348 = vmatpush1.bf16.msra.mxu0 0
        %1349 = vmatprep.mubr.bf16.mxu0 0
        %1350 = vmatmul.mubr.bf16.gmra.mrb[0].mxu0 %v795
        %v1351 = vpop.f32.mrb[0].mxu0
        %v1352 = vadd.f32 %v765, %v1351
        %v1353 = vpop.f32.mrb[0].mxu0
        %v1354 = vpop.f32.mrb[0].mxu0
        %v1355 = vpop.f32.mrb[0].mxu0
        %1356 = vdwg.mxu0
        %v1361 = vunpack.c.l.b16 %v694
        %v1362 = vunpack.c.l.b16 %v695
        %v1363 = vunpack.c.l.b16 %v696
        %v1364 = vunpack.c.l.b16 %v697
        %v1365 = vpack.c.b16 %v1362, %v1361
        %v1366 = vpack.c.b16 %v1364, %v1363
        %1369 = vmatprep.subr.bf16.mxu0 0
        %1370 = vmatpush1.bf16.msra.mxu0 %v1365
        %1371 = vmatprep.subr.bf16.mxu0 0
        %1372 = vmatpush1.bf16.msra.mxu0 %v1366
        %1373 = vmatprep.subr.bf16.mxu0 0
        %1374 = vmatpush1.bf16.msra.mxu0 0
        %1375 = vmatprep.subr.bf16.mxu0 0
        %1376 = vmatpush1.bf16.msra.mxu0 0
        %1377 = vmatprep.subr.bf16.mxu0 0
        %1378 = vmatpush1.bf16.msra.mxu0 0
        %1379 = vmatprep.subr.bf16.mxu0 0
        %1380 = vmatpush1.bf16.msra.mxu0 0
        %1381 = vmatprep.subr.bf16.mxu0 0
        %1382 = vmatpush1.bf16.msra.mxu0 0
        %1383 = vmatprep.subr.bf16.mxu0 0
        %1384 = vmatpush1.bf16.msra.mxu0 0
        %1385 = vmatprep.subr.bf16.mxu0 0
        %1386 = vmatpush1.bf16.msra.mxu0 0
        %1387 = vmatprep.subr.bf16.mxu0 0
        %1388 = vmatpush1.bf16.msra.mxu0 0
        %1389 = vmatprep.subr.bf16.mxu0 0
        %1390 = vmatpush1.bf16.msra.mxu0 0
        %1391 = vmatprep.subr.bf16.mxu0 0
        %1392 = vmatpush1.bf16.msra.mxu0 0
        %1393 = vmatprep.subr.bf16.mxu0 0
        %1394 = vmatpush1.bf16.msra.mxu0 0
        %1395 = vmatprep.subr.bf16.mxu0 0
        %1396 = vmatpush1.bf16.msra.mxu0 0
        %1397 = vmatprep.subr.bf16.mxu0 0
        %1398 = vmatpush1.bf16.msra.mxu0 0
        %1399 = vmatprep.subr.bf16.mxu0 0
        %1400 = vmatpush1.bf16.msra.mxu0 0
        %1401 = vmatprep.mubr.bf16.mxu0 0
        %1402 = vmatmul.mubr.bf16.gmra.mrb[0].mxu0 %v795
        %v1403 = vpop.f32.mrb[0].mxu0
        %v1404 = vadd.f32 %v769, %v1403
        %v1405 = vpop.f32.mrb[0].mxu0
        %v1406 = vpop.f32.mrb[0].mxu0
        %v1407 = vpop.f32.mrb[0].mxu0
        %1408 = vdwg.mxu0
        %v1409 = vpack.c.bf16 %v832, %v832
        %v1410 = vpack.c.bf16 %v884, %v884
        %v1411 = vpack.c.bf16 %v936, %v936
        %v1412 = vpack.c.bf16 %v988, %v988
        %v1413 = vpack.c.bf16 %v1040, %v1040
        %v1414 = vpack.c.bf16 %v1092, %v1092
        %v1415 = vpack.c.bf16 %v1144, %v1144
        %v1416 = vpack.c.bf16 %v1196, %v1196
        %v1417 = vpack.c.bf16 %v1248, %v1248
        %v1418 = vpack.c.bf16 %v1300, %v1300
        %v1419 = vpack.c.bf16 %v1352, %v1352
        %v1420 = vpack.c.bf16 %v1404, %v1404
        %vm1421 = vcmask 64512
        %v1423 = vsel %vm1421, %v1409, 0
        %v1426 = vsel %vm1421, %v1413, 0
        %1428 = vmatprep.subr.bf16.mxu0 0
        %1429 = vmatpush1.bf16.xpose.msra.mxu0 %v1426
        %1430 = vmatprep.subr.bf16.mxu0 0
        %1431 = vmatpush1.bf16.xpose.msra.mxu0 0
        %1432 = vmatprep.subr.bf16.mxu0 0
        %1433 = vmatpush1.bf16.xpose.msra.mxu0 0
        %1434 = vmatprep.subr.bf16.mxu0 0
        %1435 = vmatpush1.bf16.xpose.msra.mxu0 0
        %1436 = vmatprep.subr.bf16.mxu0 0
        %1437 = vmatpush1.bf16.xpose.msra.mxu0 0
        %1438 = vmatprep.subr.bf16.mxu0 0
        %1439 = vmatpush1.bf16.xpose.msra.mxu0 0
        %1440 = vmatprep.subr.bf16.mxu0 0
        %1441 = vmatpush1.bf16.xpose.msra.mxu0 0
        %1442 = vmatprep.subr.bf16.mxu0 0
        %1443 = vmatpush1.bf16.xpose.msra.mxu0 0
        %1444 = vmatprep.subr.bf16.mxu0 0
        %1445 = vmatpush1.bf16.xpose.msra.mxu0 0
        %1446 = vmatprep.subr.bf16.mxu0 0
        %1447 = vmatpush1.bf16.xpose.msra.mxu0 0
        %1448 = vmatprep.subr.bf16.mxu0 0
        %1449 = vmatpush1.bf16.xpose.msra.mxu0 0
        %1450 = vmatprep.subr.bf16.mxu0 0
        %1451 = vmatpush1.bf16.xpose.msra.mxu0 0
        %1452 = vmatprep.subr.bf16.mxu0 0
        %1453 = vmatpush1.bf16.xpose.msra.mxu0 0
        %1454 = vmatprep.subr.bf16.mxu0 0
        %1455 = vmatpush1.bf16.xpose.msra.mxu0 0
        %1456 = vmatprep.subr.bf16.mxu0 0
        %1457 = vmatpush1.bf16.xpose.msra.mxu0 0
        %1458 = vmatprep.subr.bf16.mxu0 0
        %1459 = vmatpush1.bf16.xpose.msra.mxu0 0
        %1460 = vmatprep.mubr.bf16.mxu0 0
        %1461 = vmatmul.mubr.bf16.gmra.mrb[0].mxu0 %v1423
        %v1462 = vpop.f32.mrb[0].mxu0
        %v1463 = vadd.f32 0.0, %v1462
        %v1464 = vpop.f32.mrb[0].mxu0
        %v1465 = vpop.f32.mrb[0].mxu0
        %v1466 = vpop.f32.mrb[0].mxu0
        %1467 = vdwg.mxu0
        %v1469 = vsel %vm1421, %v1410, 0
        %v1472 = vsel %vm1421, %v1414, 0
        %1474 = vmatprep.subr.bf16.mxu0 0
        %1475 = vmatpush1.bf16.xpose.msra.mxu0 %v1472
        %1476 = vmatprep.subr.bf16.mxu0 0
        %1477 = vmatpush1.bf16.xpose.msra.mxu0 0
        %1478 = vmatprep.subr.bf16.mxu0 0
        %1479 = vmatpush1.bf16.xpose.msra.mxu0 0
        %1480 = vmatprep.subr.bf16.mxu0 0
        %1481 = vmatpush1.bf16.xpose.msra.mxu0 0
        %1482 = vmatprep.subr.bf16.mxu0 0
        %1483 = vmatpush1.bf16.xpose.msra.mxu0 0
        %1484 = vmatprep.subr.bf16.mxu0 0
        %1485 = vmatpush1.bf16.xpose.msra.mxu0 0
        %1486 = vmatprep.subr.bf16.mxu0 0
        %1487 = vmatpush1.bf16.xpose.msra.mxu0 0
        %1488 = vmatprep.subr.bf16.mxu0 0
        %1489 = vmatpush1.bf16.xpose.msra.mxu0 0
        %1490 = vmatprep.subr.bf16.mxu0 0
        %1491 = vmatpush1.bf16.xpose.msra.mxu0 0
        %1492 = vmatprep.subr.bf16.mxu0 0
        %1493 = vmatpush1.bf16.xpose.msra.mxu0 0
        %1494 = vmatprep.subr.bf16.mxu0 0
        %1495 = vmatpush1.bf16.xpose.msra.mxu0 0
        %1496 = vmatprep.subr.bf16.mxu0 0
        %1497 = vmatpush1.bf16.xpose.msra.mxu0 0
        %1498 = vmatprep.subr.bf16.mxu0 0
        %1499 = vmatpush1.bf16.xpose.msra.mxu0 0
        %1500 = vmatprep.subr.bf16.mxu0 0
        %1501 = vmatpush1.bf16.xpose.msra.mxu0 0
        %1502 = vmatprep.subr.bf16.mxu0 0
        %1503 = vmatpush1.bf16.xpose.msra.mxu0 0
        %1504 = vmatprep.subr.bf16.mxu0 0
        %1505 = vmatpush1.bf16.xpose.msra.mxu0 0
        %1506 = vmatprep.mubr.bf16.mxu0 0
        %1507 = vmatmul.mubr.bf16.gmra.mrb[0].mxu0 %v1469
        %v1508 = vpop.f32.mrb[0].mxu0
        %v1509 = vadd.f32 0.0, %v1508
        %v1510 = vpop.f32.mrb[0].mxu0
        %v1511 = vpop.f32.mrb[0].mxu0
        %v1512 = vpop.f32.mrb[0].mxu0
        %1513 = vdwg.mxu0
        %v1515 = vsel %vm1421, %v1411, 0
        %v1518 = vsel %vm1421, %v1415, 0
        %1520 = vmatprep.subr.bf16.mxu0 0
        %1521 = vmatpush1.bf16.xpose.msra.mxu0 %v1518
        %1522 = vmatprep.subr.bf16.mxu0 0
        %1523 = vmatpush1.bf16.xpose.msra.mxu0 0
        %1524 = vmatprep.subr.bf16.mxu0 0
        %1525 = vmatpush1.bf16.xpose.msra.mxu0 0
        %1526 = vmatprep.subr.bf16.mxu0 0
        %1527 = vmatpush1.bf16.xpose.msra.mxu0 0
        %1528 = vmatprep.subr.bf16.mxu0 0
        %1529 = vmatpush1.bf16.xpose.msra.mxu0 0
        %1530 = vmatprep.subr.bf16.mxu0 0
        %1531 = vmatpush1.bf16.xpose.msra.mxu0 0
        %1532 = vmatprep.subr.bf16.mxu0 0
        %1533 = vmatpush1.bf16.xpose.msra.mxu0 0
        %1534 = vmatprep.subr.bf16.mxu0 0
        %1535 = vmatpush1.bf16.xpose.msra.mxu0 0
        %1536 = vmatprep.subr.bf16.mxu0 0
        %1537 = vmatpush1.bf16.xpose.msra.mxu0 0
        %1538 = vmatprep.subr.bf16.mxu0 0
        %1539 = vmatpush1.bf16.xpose.msra.mxu0 0
        %1540 = vmatprep.subr.bf16.mxu0 0
        %1541 = vmatpush1.bf16.xpose.msra.mxu0 0
        %1542 = vmatprep.subr.bf16.mxu0 0
        %1543 = vmatpush1.bf16.xpose.msra.mxu0 0
        %1544 = vmatprep.subr.bf16.mxu0 0
        %1545 = vmatpush1.bf16.xpose.msra.mxu0 0
        %1546 = vmatprep.subr.bf16.mxu0 0
        %1547 = vmatpush1.bf16.xpose.msra.mxu0 0
        %1548 = vmatprep.subr.bf16.mxu0 0
        %1549 = vmatpush1.bf16.xpose.msra.mxu0 0
        %1550 = vmatprep.subr.bf16.mxu0 0
        %1551 = vmatpush1.bf16.xpose.msra.mxu0 0
        %1552 = vmatprep.mubr.bf16.mxu0 0
        %1553 = vmatmul.mubr.bf16.gmra.mrb[0].mxu0 %v1515
        %v1554 = vpop.f32.mrb[0].mxu0
        %v1555 = vadd.f32 0.0, %v1554
        %v1556 = vpop.f32.mrb[0].mxu0
        %v1557 = vpop.f32.mrb[0].mxu0
        %v1558 = vpop.f32.mrb[0].mxu0
        %1559 = vdwg.mxu0
        %v1561 = vsel %vm1421, %v1412, 0
        %v1564 = vsel %vm1421, %v1416, 0
        %1566 = vmatprep.subr.bf16.mxu0 0
        %1567 = vmatpush1.bf16.xpose.msra.mxu0 %v1564
        %1568 = vmatprep.subr.bf16.mxu0 0
        %1569 = vmatpush1.bf16.xpose.msra.mxu0 0
        %1570 = vmatprep.subr.bf16.mxu0 0
        %1571 = vmatpush1.bf16.xpose.msra.mxu0 0
        %1572 = vmatprep.subr.bf16.mxu0 0
        %1573 = vmatpush1.bf16.xpose.msra.mxu0 0
        %1574 = vmatprep.subr.bf16.mxu0 0
        %1575 = vmatpush1.bf16.xpose.msra.mxu0 0
        %1576 = vmatprep.subr.bf16.mxu0 0
        %1577 = vmatpush1.bf16.xpose.msra.mxu0 0
        %1578 = vmatprep.subr.bf16.mxu0 0
        %1579 = vmatpush1.bf16.xpose.msra.mxu0 0
        %1580 = vmatprep.subr.bf16.mxu0 0
        %1581 = vmatpush1.bf16.xpose.msra.mxu0 0
        %1582 = vmatprep.subr.bf16.mxu0 0
        %1583 = vmatpush1.bf16.xpose.msra.mxu0 0
        %1584 = vmatprep.subr.bf16.mxu0 0
        %1585 = vmatpush1.bf16.xpose.msra.mxu0 0
        %1586 = vmatprep.subr.bf16.mxu0 0
        %1587 = vmatpush1.bf16.xpose.msra.mxu0 0
        %1588 = vmatprep.subr.bf16.mxu0 0
        %1589 = vmatpush1.bf16.xpose.msra.mxu0 0
        %1590 = vmatprep.subr.bf16.mxu0 0
        %1591 = vmatpush1.bf16.xpose.msra.mxu0 0
        %1592 = vmatprep.subr.bf16.mxu0 0
        %1593 = vmatpush1.bf16.xpose.msra.mxu0 0
        %1594 = vmatprep.subr.bf16.mxu0 0
        %1595 = vmatpush1.bf16.xpose.msra.mxu0 0
        %1596 = vmatprep.subr.bf16.mxu0 0
        %1597 = vmatpush1.bf16.xpose.msra.mxu0 0
        %1598 = vmatprep.mubr.bf16.mxu0 0
        %1599 = vmatmul.mubr.bf16.gmra.mrb[0].mxu0 %v1561
        %v1600 = vpop.f32.mrb[0].mxu0
        %v1601 = vadd.f32 0.0, %v1600
        %v1602 = vpop.f32.mrb[0].mxu0
        %v1603 = vpop.f32.mrb[0].mxu0
        %v1604 = vpop.f32.mrb[0].mxu0
        %1605 = vdwg.mxu0
        %v1606 = vmul.f32 %v1463, 0.35355338
        %v1607 = vmul.f32 %v1509, 0.35355338
        %v1608 = vmul.f32 %v1555, 0.35355338
        %v1609 = vmul.f32 %v1601, 0.35355338
        %v1610 = vlaneseq
        %v1611 = vshrl.u32 %v1610, 7
        %v1612 = vlaneseq
        %v1613 = vand.u32 %v1612, 127
        %vm1614 = vcmp.ge.s32.totalorder %v1611, %v1613
        %v1615 = vsel %vm1614, %v1606, -1e+30
        %v1616 = vsel %vm1614, %v1607, -1e+30
        %v1617 = vsel %vm1614, %v1608, -1e+30
        %v1618 = vsel %vm1614, %v1609, -1e+30
        %v1619 = vsel %vm1421, %v1615, -inf
        %1620 = vmax.xlane.f32.xlu0 %v1619
        %v1621 = vpop.xlane.xlu0 %1620
        %v1622 = vsel %vm1421, %v1616, -inf
        %1623 = vmax.xlane.f32.xlu0 %v1622
        %v1624 = vpop.xlane.xlu0 %1623
        %v1625 = vsel %vm1421, %v1617, -inf
        %1626 = vmax.xlane.f32.xlu0 %v1625
        %v1627 = vpop.xlane.xlu0 %1626
        %v1628 = vsel %vm1421, %v1618, -inf
        %1629 = vmax.xlane.f32.xlu0 %v1628
        %v1630 = vpop.xlane.xlu0 %1629
        %v1631 = vsub.f32 %v1615, %v1621
        %v1632 = vsub.f32 %v1616, %v1624
        %v1633 = vsub.f32 %v1617, %v1627
        %v1634 = vsub.f32 %v1618, %v1630
        %v1635 = vmul.f32 %v1631, 1.442695
        %v1636 = vpow.pop %v1635
        %v1637 = vmul.f32 %v1632, 1.442695
        %v1638 = vpow.pop %v1637
        %v1639 = vmul.f32 %v1633, 1.442695
        %v1640 = vpow.pop %v1639
        %v1641 = vmul.f32 %v1634, 1.442695
        %v1642 = vpow.pop %v1641
        %v1643 = vsel %vm1421, %v1636, 0.0
        %1644 = vadd.xlane.f32.xlu0 %v1643
        %v1645 = vpop.xlane.xlu0 %1644
        %v1646 = vsel %vm1421, %v1638, 0.0
        %1647 = vadd.xlane.f32.xlu0 %v1646
        %v1648 = vpop.xlane.xlu0 %1647
        %v1649 = vsel %vm1421, %v1640, 0.0
        %1650 = vadd.xlane.f32.xlu0 %v1649
        %v1651 = vpop.xlane.xlu0 %1650
        %v1652 = vsel %vm1421, %v1642, 0.0
        %1653 = vadd.xlane.f32.xlu0 %v1652
        %v1654 = vpop.xlane.xlu0 %1653
        %v1655 = vrcp.pop %v1645
        %v1656 = vrcp.pop %v1648
        %v1657 = vrcp.pop %v1651
        %v1658 = vrcp.pop %v1654
        %v1659 = vmul.f32 %v1636, %v1655
        %v1660 = vmul.f32 %v1638, %v1656
        %v1661 = vmul.f32 %v1640, %v1657
        %v1662 = vmul.f32 %v1642, %v1658
        %v1663 = vpack.c.bf16 %v1659, %v1659
        %v1664 = vpack.c.bf16 %v1660, %v1660
        %v1665 = vpack.c.bf16 %v1661, %v1661
        %v1666 = vpack.c.bf16 %v1662, %v1662
        %v1668 = vsel %vm1421, %v1663, 0
        %vm1670 = vcmask 1043456
        %v1672 = vsel %vm1670, %v1417, 0
        %1674 = vmatprep.subr.bf16.mxu0 0
        %1675 = vmatpush1.bf16.msra.mxu0 %v1672
        %1676 = vmatprep.subr.bf16.mxu0 0
        %1677 = vmatpush1.bf16.msra.mxu0 0
        %1678 = vmatprep.subr.bf16.mxu0 0
        %1679 = vmatpush1.bf16.msra.mxu0 0
        %1680 = vmatprep.subr.bf16.mxu0 0
        %1681 = vmatpush1.bf16.msra.mxu0 0
        %1682 = vmatprep.subr.bf16.mxu0 0
        %1683 = vmatpush1.bf16.msra.mxu0 0
        %1684 = vmatprep.subr.bf16.mxu0 0
        %1685 = vmatpush1.bf16.msra.mxu0 0
        %1686 = vmatprep.subr.bf16.mxu0 0
        %1687 = vmatpush1.bf16.msra.mxu0 0
        %1688 = vmatprep.subr.bf16.mxu0 0
        %1689 = vmatpush1.bf16.msra.mxu0 0
        %1690 = vmatprep.subr.bf16.mxu0 0
        %1691 = vmatpush1.bf16.msra.mxu0 0
        %1692 = vmatprep.subr.bf16.mxu0 0
        %1693 = vmatpush1.bf16.msra.mxu0 0
        %1694 = vmatprep.subr.bf16.mxu0 0
        %1695 = vmatpush1.bf16.msra.mxu0 0
        %1696 = vmatprep.subr.bf16.mxu0 0
        %1697 = vmatpush1.bf16.msra.mxu0 0
        %1698 = vmatprep.subr.bf16.mxu0 0
        %1699 = vmatpush1.bf16.msra.mxu0 0
        %1700 = vmatprep.subr.bf16.mxu0 0
        %1701 = vmatpush1.bf16.msra.mxu0 0
        %1702 = vmatprep.subr.bf16.mxu0 0
        %1703 = vmatpush1.bf16.msra.mxu0 0
        %1704 = vmatprep.subr.bf16.mxu0 0
        %1705 = vmatpush1.bf16.msra.mxu0 0
        %1706 = vmatprep.mubr.bf16.mxu0 0
        %1707 = vmatmul.mubr.bf16.gmra.mrb[0].mxu0 %v1668
        %v1708 = vpop.f32.mrb[0].mxu0
        %v1709 = vadd.f32 0.0, %v1708
        %v1710 = vpop.f32.mrb[0].mxu0
        %v1711 = vpop.f32.mrb[0].mxu0
        %v1712 = vpop.f32.mrb[0].mxu0
        %1713 = vdwg.mxu0
        %v1715 = vsel %vm1421, %v1664, 0
        %v1718 = vsel %vm1670, %v1418, 0
        %1720 = vmatprep.subr.bf16.mxu0 0
        %1721 = vmatpush1.bf16.msra.mxu0 %v1718
        %1722 = vmatprep.subr.bf16.mxu0 0
        %1723 = vmatpush1.bf16.msra.mxu0 0
        %1724 = vmatprep.subr.bf16.mxu0 0
        %1725 = vmatpush1.bf16.msra.mxu0 0
        %1726 = vmatprep.subr.bf16.mxu0 0
        %1727 = vmatpush1.bf16.msra.mxu0 0
        %1728 = vmatprep.subr.bf16.mxu0 0
        %1729 = vmatpush1.bf16.msra.mxu0 0
        %1730 = vmatprep.subr.bf16.mxu0 0
        %1731 = vmatpush1.bf16.msra.mxu0 0
        %1732 = vmatprep.subr.bf16.mxu0 0
        %1733 = vmatpush1.bf16.msra.mxu0 0
        %1734 = vmatprep.subr.bf16.mxu0 0
        %1735 = vmatpush1.bf16.msra.mxu0 0
        %1736 = vmatprep.subr.bf16.mxu0 0
        %1737 = vmatpush1.bf16.msra.mxu0 0
        %1738 = vmatprep.subr.bf16.mxu0 0
        %1739 = vmatpush1.bf16.msra.mxu0 0
        %1740 = vmatprep.subr.bf16.mxu0 0
        %1741 = vmatpush1.bf16.msra.mxu0 0
        %1742 = vmatprep.subr.bf16.mxu0 0
        %1743 = vmatpush1.bf16.msra.mxu0 0
        %1744 = vmatprep.subr.bf16.mxu0 0
        %1745 = vmatpush1.bf16.msra.mxu0 0
        %1746 = vmatprep.subr.bf16.mxu0 0
        %1747 = vmatpush1.bf16.msra.mxu0 0
        %1748 = vmatprep.subr.bf16.mxu0 0
        %1749 = vmatpush1.bf16.msra.mxu0 0
        %1750 = vmatprep.subr.bf16.mxu0 0
        %1751 = vmatpush1.bf16.msra.mxu0 0
        %1752 = vmatprep.mubr.bf16.mxu0 0
        %1753 = vmatmul.mubr.bf16.gmra.mrb[0].mxu0 %v1715
        %v1754 = vpop.f32.mrb[0].mxu0
        %v1755 = vadd.f32 0.0, %v1754
        %v1756 = vpop.f32.mrb[0].mxu0
        %v1757 = vpop.f32.mrb[0].mxu0
        %v1758 = vpop.f32.mrb[0].mxu0
        %1759 = vdwg.mxu0
        %v1761 = vsel %vm1421, %v1665, 0
        %v1764 = vsel %vm1670, %v1419, 0
        %1766 = vmatprep.subr.bf16.mxu0 0
        %1767 = vmatpush1.bf16.msra.mxu0 %v1764
        %1768 = vmatprep.subr.bf16.mxu0 0
        %1769 = vmatpush1.bf16.msra.mxu0 0
        %1770 = vmatprep.subr.bf16.mxu0 0
        %1771 = vmatpush1.bf16.msra.mxu0 0
        %1772 = vmatprep.subr.bf16.mxu0 0
        %1773 = vmatpush1.bf16.msra.mxu0 0
        %1774 = vmatprep.subr.bf16.mxu0 0
        %1775 = vmatpush1.bf16.msra.mxu0 0
        %1776 = vmatprep.subr.bf16.mxu0 0
        %1777 = vmatpush1.bf16.msra.mxu0 0
        %1778 = vmatprep.subr.bf16.mxu0 0
        %1779 = vmatpush1.bf16.msra.mxu0 0
        %1780 = vmatprep.subr.bf16.mxu0 0
        %1781 = vmatpush1.bf16.msra.mxu0 0
        %1782 = vmatprep.subr.bf16.mxu0 0
        %1783 = vmatpush1.bf16.msra.mxu0 0
        %1784 = vmatprep.subr.bf16.mxu0 0
        %1785 = vmatpush1.bf16.msra.mxu0 0
        %1786 = vmatprep.subr.bf16.mxu0 0
        %1787 = vmatpush1.bf16.msra.mxu0 0
        %1788 = vmatprep.subr.bf16.mxu0 0
        %1789 = vmatpush1.bf16.msra.mxu0 0
        %1790 = vmatprep.subr.bf16.mxu0 0
        %1791 = vmatpush1.bf16.msra.mxu0 0
        %1792 = vmatprep.subr.bf16.mxu0 0
        %1793 = vmatpush1.bf16.msra.mxu0 0
        %1794 = vmatprep.subr.bf16.mxu0 0
        %1795 = vmatpush1.bf16.msra.mxu0 0
        %1796 = vmatprep.subr.bf16.mxu0 0
        %1797 = vmatpush1.bf16.msra.mxu0 0
        %1798 = vmatprep.mubr.bf16.mxu0 0
        %1799 = vmatmul.mubr.bf16.gmra.mrb[0].mxu0 %v1761
        %v1800 = vpop.f32.mrb[0].mxu0
        %v1801 = vadd.f32 0.0, %v1800
        %v1802 = vpop.f32.mrb[0].mxu0
        %v1803 = vpop.f32.mrb[0].mxu0
        %v1804 = vpop.f32.mrb[0].mxu0
        %1805 = vdwg.mxu0
        %v1807 = vsel %vm1421, %v1666, 0
        %v1810 = vsel %vm1670, %v1420, 0
        %1812 = vmatprep.subr.bf16.mxu0 0
        %1813 = vmatpush1.bf16.msra.mxu0 %v1810
        %1814 = vmatprep.subr.bf16.mxu0 0
        %1815 = vmatpush1.bf16.msra.mxu0 0
        %1816 = vmatprep.subr.bf16.mxu0 0
        %1817 = vmatpush1.bf16.msra.mxu0 0
        %1818 = vmatprep.subr.bf16.mxu0 0
        %1819 = vmatpush1.bf16.msra.mxu0 0
        %1820 = vmatprep.subr.bf16.mxu0 0
        %1821 = vmatpush1.bf16.msra.mxu0 0
        %1822 = vmatprep.subr.bf16.mxu0 0
        %1823 = vmatpush1.bf16.msra.mxu0 0
        %1824 = vmatprep.subr.bf16.mxu0 0
        %1825 = vmatpush1.bf16.msra.mxu0 0
        %1826 = vmatprep.subr.bf16.mxu0 0
        %1827 = vmatpush1.bf16.msra.mxu0 0
        %1828 = vmatprep.subr.bf16.mxu0 0
        %1829 = vmatpush1.bf16.msra.mxu0 0
        %1830 = vmatprep.subr.bf16.mxu0 0
        %1831 = vmatpush1.bf16.msra.mxu0 0
        %1832 = vmatprep.subr.bf16.mxu0 0
        %1833 = vmatpush1.bf16.msra.mxu0 0
        %1834 = vmatprep.subr.bf16.mxu0 0
        %1835 = vmatpush1.bf16.msra.mxu0 0
        %1836 = vmatprep.subr.bf16.mxu0 0
        %1837 = vmatpush1.bf16.msra.mxu0 0
        %1838 = vmatprep.subr.bf16.mxu0 0
        %1839 = vmatpush1.bf16.msra.mxu0 0
        %1840 = vmatprep.subr.bf16.mxu0 0
        %1841 = vmatpush1.bf16.msra.mxu0 0
        %1842 = vmatprep.subr.bf16.mxu0 0
        %1843 = vmatpush1.bf16.msra.mxu0 0
        %1844 = vmatprep.mubr.bf16.mxu0 0
        %1845 = vmatmul.mubr.bf16.gmra.mrb[0].mxu0 %v1807
        %v1846 = vpop.f32.mrb[0].mxu0
        %v1847 = vadd.f32 0.0, %v1846
        %v1848 = vpop.f32.mrb[0].mxu0
        %v1849 = vpop.f32.mrb[0].mxu0
        %v1850 = vpop.f32.mrb[0].mxu0
        %1851 = vdwg.mxu0
        %v1852 = vpack.c.bf16 %v1709, %v1709
        %v1853 = vpack.c.bf16 %v1755, %v1755
        %v1854 = vpack.c.bf16 %v1801, %v1801
        %v1855 = vpack.c.bf16 %v1847, %v1847
        %v1856 = vld [vmem:[#allocation11] sm:$0xf]
        %v1857 = vld [vmem:[#allocation11 + $0x4] sm:$0xf]
        %v1858 = vld [vmem:[#allocation11 + $0x8] sm:$0xf]
        %v1859 = vld [vmem:[#allocation11 + $0xc] sm:$0xf]
        %v1861 = vsel %vm1421, %v1852, 0
        %v1864 = vsel %vm1670, %v1856, 0
        %1866 = vmatprep.subr.bf16.mxu0 0
        %1867 = vmatpush1.bf16.msra.mxu0 %v1864
        %1868 = vmatprep.subr.bf16.mxu0 0
        %1869 = vmatpush1.bf16.msra.mxu0 0
        %1870 = vmatprep.subr.bf16.mxu0 0
        %1871 = vmatpush1.bf16.msra.mxu0 0
        %1872 = vmatprep.subr.bf16.mxu0 0
        %1873 = vmatpush1.bf16.msra.mxu0 0
        %1874 = vmatprep.subr.bf16.mxu0 0
        %1875 = vmatpush1.bf16.msra.mxu0 0
        %1876 = vmatprep.subr.bf16.mxu0 0
        %1877 = vmatpush1.bf16.msra.mxu0 0
        %1878 = vmatprep.subr.bf16.mxu0 0
        %1879 = vmatpush1.bf16.msra.mxu0 0
        %1880 = vmatprep.subr.bf16.mxu0 0
        %1881 = vmatpush1.bf16.msra.mxu0 0
        %1882 = vmatprep.subr.bf16.mxu0 0
        %1883 = vmatpush1.bf16.msra.mxu0 0
        %1884 = vmatprep.subr.bf16.mxu0 0
        %1885 = vmatpush1.bf16.msra.mxu0 0
        %1886 = vmatprep.subr.bf16.mxu0 0
        %1887 = vmatpush1.bf16.msra.mxu0 0
        %1888 = vmatprep.subr.bf16.mxu0 0
        %1889 = vmatpush1.bf16.msra.mxu0 0
        %1890 = vmatprep.subr.bf16.mxu0 0
        %1891 = vmatpush1.bf16.msra.mxu0 0
        %1892 = vmatprep.subr.bf16.mxu0 0
        %1893 = vmatpush1.bf16.msra.mxu0 0
        %1894 = vmatprep.subr.bf16.mxu0 0
        %1895 = vmatpush1.bf16.msra.mxu0 0
        %1896 = vmatprep.subr.bf16.mxu0 0
        %1897 = vmatpush1.bf16.msra.mxu0 0
        %1898 = vmatprep.mubr.bf16.mxu0 0
        %1899 = vmatmul.mubr.bf16.gmra.mrb[0].mxu0 %v1861
        %v1900 = vpop.f32.mrb[0].mxu0
        %v1901 = vadd.f32 0.0, %v1900
        %v1902 = vpop.f32.mrb[0].mxu0
        %v1903 = vpop.f32.mrb[0].mxu0
        %v1904 = vpop.f32.mrb[0].mxu0
        %1905 = vdwg.mxu0
        %v1907 = vsel %vm1421, %v1853, 0
        %v1910 = vsel %vm1670, %v1857, 0
        %1912 = vmatprep.subr.bf16.mxu0 0
        %1913 = vmatpush1.bf16.msra.mxu0 %v1910
        %1914 = vmatprep.subr.bf16.mxu0 0
        %1915 = vmatpush1.bf16.msra.mxu0 0
        %1916 = vmatprep.subr.bf16.mxu0 0
        %1917 = vmatpush1.bf16.msra.mxu0 0
        %1918 = vmatprep.subr.bf16.mxu0 0
        %1919 = vmatpush1.bf16.msra.mxu0 0
        %1920 = vmatprep.subr.bf16.mxu0 0
        %1921 = vmatpush1.bf16.msra.mxu0 0
        %1922 = vmatprep.subr.bf16.mxu0 0
        %1923 = vmatpush1.bf16.msra.mxu0 0
        %1924 = vmatprep.subr.bf16.mxu0 0
        %1925 = vmatpush1.bf16.msra.mxu0 0
        %1926 = vmatprep.subr.bf16.mxu0 0
        %1927 = vmatpush1.bf16.msra.mxu0 0
        %1928 = vmatprep.subr.bf16.mxu0 0
        %1929 = vmatpush1.bf16.msra.mxu0 0
        %1930 = vmatprep.subr.bf16.mxu0 0
        %1931 = vmatpush1.bf16.msra.mxu0 0
        %1932 = vmatprep.subr.bf16.mxu0 0
        %1933 = vmatpush1.bf16.msra.mxu0 0
        %1934 = vmatprep.subr.bf16.mxu0 0
        %1935 = vmatpush1.bf16.msra.mxu0 0
        %1936 = vmatprep.subr.bf16.mxu0 0
        %1937 = vmatpush1.bf16.msra.mxu0 0
        %1938 = vmatprep.subr.bf16.mxu0 0
        %1939 = vmatpush1.bf16.msra.mxu0 0
        %1940 = vmatprep.subr.bf16.mxu0 0
        %1941 = vmatpush1.bf16.msra.mxu0 0
        %1942 = vmatprep.subr.bf16.mxu0 0
        %1943 = vmatpush1.bf16.msra.mxu0 0
        %1944 = vmatprep.mubr.bf16.mxu0 0
        %1945 = vmatmul.mubr.bf16.gmra.mrb[0].mxu0 %v1907
        %v1946 = vpop.f32.mrb[0].mxu0
        %v1947 = vadd.f32 0.0, %v1946
        %v1948 = vpop.f32.mrb[0].mxu0
        %v1949 = vpop.f32.mrb[0].mxu0
        %v1950 = vpop.f32.mrb[0].mxu0
        %1951 = vdwg.mxu0
        %v1953 = vsel %vm1421, %v1854, 0
        %v1956 = vsel %vm1670, %v1858, 0
        %1958 = vmatprep.subr.bf16.mxu0 0
        %1959 = vmatpush1.bf16.msra.mxu0 %v1956
        %1960 = vmatprep.subr.bf16.mxu0 0
        %1961 = vmatpush1.bf16.msra.mxu0 0
        %1962 = vmatprep.subr.bf16.mxu0 0
        %1963 = vmatpush1.bf16.msra.mxu0 0
        %1964 = vmatprep.subr.bf16.mxu0 0
        %1965 = vmatpush1.bf16.msra.mxu0 0
        %1966 = vmatprep.subr.bf16.mxu0 0
        %1967 = vmatpush1.bf16.msra.mxu0 0
        %1968 = vmatprep.subr.bf16.mxu0 0
        %1969 = vmatpush1.bf16.msra.mxu0 0
        %1970 = vmatprep.subr.bf16.mxu0 0
        %1971 = vmatpush1.bf16.msra.mxu0 0
        %1972 = vmatprep.subr.bf16.mxu0 0
        %1973 = vmatpush1.bf16.msra.mxu0 0
        %1974 = vmatprep.subr.bf16.mxu0 0
        %1975 = vmatpush1.bf16.msra.mxu0 0
        %1976 = vmatprep.subr.bf16.mxu0 0
        %1977 = vmatpush1.bf16.msra.mxu0 0
        %1978 = vmatprep.subr.bf16.mxu0 0
        %1979 = vmatpush1.bf16.msra.mxu0 0
        %1980 = vmatprep.subr.bf16.mxu0 0
        %1981 = vmatpush1.bf16.msra.mxu0 0
        %1982 = vmatprep.subr.bf16.mxu0 0
        %1983 = vmatpush1.bf16.msra.mxu0 0
        %1984 = vmatprep.subr.bf16.mxu0 0
        %1985 = vmatpush1.bf16.msra.mxu0 0
        %1986 = vmatprep.subr.bf16.mxu0 0
        %1987 = vmatpush1.bf16.msra.mxu0 0
        %1988 = vmatprep.subr.bf16.mxu0 0
        %1989 = vmatpush1.bf16.msra.mxu0 0
        %1990 = vmatprep.mubr.bf16.mxu0 0
        %1991 = vmatmul.mubr.bf16.gmra.mrb[0].mxu0 %v1953
        %v1992 = vpop.f32.mrb[0].mxu0
        %v1993 = vadd.f32 0.0, %v1992
        %v1994 = vpop.f32.mrb[0].mxu0
        %v1995 = vpop.f32.mrb[0].mxu0
        %v1996 = vpop.f32.mrb[0].mxu0
        %1997 = vdwg.mxu0
        %v1999 = vsel %vm1421, %v1855, 0
        %v2002 = vsel %vm1670, %v1859, 0
        %2004 = vmatprep.subr.bf16.mxu0 0
        %2005 = vmatpush1.bf16.msra.mxu0 %v2002
        %2006 = vmatprep.subr.bf16.mxu0 0
        %2007 = vmatpush1.bf16.msra.mxu0 0
        %2008 = vmatprep.subr.bf16.mxu0 0
        %2009 = vmatpush1.bf16.msra.mxu0 0
        %2010 = vmatprep.subr.bf16.mxu0 0
        %2011 = vmatpush1.bf16.msra.mxu0 0
        %2012 = vmatprep.subr.bf16.mxu0 0
        %2013 = vmatpush1.bf16.msra.mxu0 0
        %2014 = vmatprep.subr.bf16.mxu0 0
        %2015 = vmatpush1.bf16.msra.mxu0 0
        %2016 = vmatprep.subr.bf16.mxu0 0
        %2017 = vmatpush1.bf16.msra.mxu0 0
        %2018 = vmatprep.subr.bf16.mxu0 0
        %2019 = vmatpush1.bf16.msra.mxu0 0
        %2020 = vmatprep.subr.bf16.mxu0 0
        %2021 = vmatpush1.bf16.msra.mxu0 0
        %2022 = vmatprep.subr.bf16.mxu0 0
        %2023 = vmatpush1.bf16.msra.mxu0 0
        %2024 = vmatprep.subr.bf16.mxu0 0
        %2025 = vmatpush1.bf16.msra.mxu0 0
        %2026 = vmatprep.subr.bf16.mxu0 0
        %2027 = vmatpush1.bf16.msra.mxu0 0
        %2028 = vmatprep.subr.bf16.mxu0 0
        %2029 = vmatpush1.bf16.msra.mxu0 0
        %2030 = vmatprep.subr.bf16.mxu0 0
        %2031 = vmatpush1.bf16.msra.mxu0 0
        %2032 = vmatprep.subr.bf16.mxu0 0
        %2033 = vmatpush1.bf16.msra.mxu0 0
        %2034 = vmatprep.subr.bf16.mxu0 0
        %2035 = vmatpush1.bf16.msra.mxu0 0
        %2036 = vmatprep.mubr.bf16.mxu0 0
        %2037 = vmatmul.mubr.bf16.gmra.mrb[0].mxu0 %v1999
        %v2038 = vpop.f32.mrb[0].mxu0
        %v2039 = vadd.f32 0.0, %v2038
        %v2040 = vpop.f32.mrb[0].mxu0
        %v2041 = vpop.f32.mrb[0].mxu0
        %v2042 = vpop.f32.mrb[0].mxu0
        %2043 = vdwg.mxu0
        %v2044 = vsel %vm620, %v1901, 0.0
        %v2045 = vsel %vm620, %v1947, 0.0
        %v2046 = vadd.f32 %v2044, %v2045
        %v2047 = vsel %vm620, %v1993, 0.0
        %v2048 = vadd.f32 %v2046, %v2047
        %v2049 = vsel %vm620, %v2039, 0.0
        %v2050 = vadd.f32 %v2048, %v2049
        %v2051 = vld [vmem:[#allocation13] sm:$0x1]
        %v2053 = vlaneseq
        %v2054 = vshrl.u32 %v2053, 7
        %v2055 = vsub.s32 0, %v2054
        %v2056 = vrot.slane %v2051, %v2055
        %v2058 = vadd.f32 %v2050, %v2056
        %v2059 = vadd.f32 %v617, %v2058
        %v2060 = vld [vmem:[#allocation14] sm:$0x1]
        %v2061 = vld [vmem:[#allocation16] sm:$0x1]
        %v2062 = vsel %vm620, %v2059, 0.0
        %2063 = vadd.xlane.f32.xlu0 %v2062
        %v2064 = vpop.xlane.xlu0 %2063
        %v2065 = vmul.f32 %v2064, %v624
        %v2066 = vsub.f32 %v2059, %v2065
        %v2067 = vmul.f32 %v2066, %v2066
        %v2068 = vsel %vm620, %v2067, 0.0
        %2069 = vadd.xlane.f32.xlu0 %v2068
        %v2070 = vpop.xlane.xlu0 %2069
        %v2071 = vmul.f32 %v2070, %v624
        %v2072 = vadd.f32 %v2071, 1e-05
        %v2073 = vrsqrt.pop %v2072
        %v2074 = vmul.f32 %v2066, %v2073
        %v2076 = vlaneseq
        %v2077 = vshrl.u32 %v2076, 7
        %v2078 = vsub.s32 0, %v2077
        %v2079 = vrot.slane %v2060, %v2078
        %v2081 = vmul.f32 %v2079, %v2074
        %v2083 = vlaneseq
        %v2084 = vshrl.u32 %v2083, 7
        %v2085 = vsub.s32 0, %v2084
        %v2086 = vrot.slane %v2061, %v2085
        %v2088 = vadd.f32 %v2081, %v2086
        %v2089 = vpack.c.bf16 %v2088, %v2088
        %v2090 = vld [vmem:[#allocation17] sm:$0xf]
        %v2091 = vld [vmem:[#allocation17 + $0x4] sm:$0xf]
        %v2092 = vld [vmem:[#allocation17 + $0x8] sm:$0xf]
        %v2093 = vld [vmem:[#allocation17 + $0xc] sm:$0xf]
        %v2094 = vld [vmem:[#allocation19] sm:$0x1]
        %v2096 = vlaneseq
        %v2097 = vshrl.u32 %v2096, 7
        %v2098 = vsub.s32 0, %v2097
        %v2099 = vrot.slane %v2094, %v2098
        %v2105 = vunpack.c.l.b16 %v2090
        %v2106 = vunpack.c.l.b16 %v2091
        %v2107 = vunpack.c.l.b16 %v2092
        %v2108 = vunpack.c.l.b16 %v2093
        %v2109 = vpack.c.b16 %v2106, %v2105
        %v2110 = vpack.c.b16 %v2108, %v2107
        %v2114 = vsel %vm620, %v2089, 0
        %2116 = vmatprep.subr.bf16.mxu0 0
        %2117 = vmatpush1.bf16.msra.mxu0 %v2109
        %2118 = vmatprep.subr.bf16.mxu0 0
        %2119 = vmatpush1.bf16.msra.mxu0 %v2110
        %2120 = vmatprep.subr.bf16.mxu0 0
        %2121 = vmatpush1.bf16.msra.mxu0 0
        %2122 = vmatprep.subr.bf16.mxu0 0
        %2123 = vmatpush1.bf16.msra.mxu0 0
        %2124 = vmatprep.subr.bf16.mxu0 0
        %2125 = vmatpush1.bf16.msra.mxu0 0
        %2126 = vmatprep.subr.bf16.mxu0 0
        %2127 = vmatpush1.bf16.msra.mxu0 0
        %2128 = vmatprep.subr.bf16.mxu0 0
        %2129 = vmatpush1.bf16.msra.mxu0 0
        %2130 = vmatprep.subr.bf16.mxu0 0
        %2131 = vmatpush1.bf16.msra.mxu0 0
        %2132 = vmatprep.subr.bf16.mxu0 0
        %2133 = vmatpush1.bf16.msra.mxu0 0
        %2134 = vmatprep.subr.bf16.mxu0 0
        %2135 = vmatpush1.bf16.msra.mxu0 0
        %2136 = vmatprep.subr.bf16.mxu0 0
        %2137 = vmatpush1.bf16.msra.mxu0 0
        %2138 = vmatprep.subr.bf16.mxu0 0
        %2139 = vmatpush1.bf16.msra.mxu0 0
        %2140 = vmatprep.subr.bf16.mxu0 0
        %2141 = vmatpush1.bf16.msra.mxu0 0
        %2142 = vmatprep.subr.bf16.mxu0 0
        %2143 = vmatpush1.bf16.msra.mxu0 0
        %2144 = vmatprep.subr.bf16.mxu0 0
        %2145 = vmatpush1.bf16.msra.mxu0 0
        %2146 = vmatprep.subr.bf16.mxu0 0
        %2147 = vmatpush1.bf16.msra.mxu0 0
        %2148 = vmatprep.mubr.bf16.mxu0 0
        %2149 = vmatmul.mubr.bf16.gmra.mrb[0].mxu0 %v2114
        %v2150 = vpop.f32.mrb[0].mxu0
        %v2151 = vadd.f32 %v2099, %v2150
        %v2152 = vpop.f32.mrb[0].mxu0
        %v2153 = vpop.f32.mrb[0].mxu0
        %v2154 = vpop.f32.mrb[0].mxu0
        %2155 = vdwg.mxu0
        %v2156 = vmul.f32 %v2151, 0.5
        %v2157 = vmul.f32 %v2151, %v2151
        %v2158 = vmul.f32 %v2151, %v2157
        %v2159 = vmul.f32 %v2158, 0.044715
        %v2160 = vadd.f32 %v2151, %v2159
        %v2161 = vmul.f32 %v2160, 0.7978846
        %v2162 = vtanh.pop %v2161
        %v2163 = vadd.f32 %v2162, 1.0
        %v2164 = vmul.f32 %v2156, %v2163
        %v2165 = vpack.c.bf16 %v2164, %v2164
        %v2166 = vld [vmem:[#allocation20] sm:$0xf]
        %v2167 = vld [vmem:[#allocation20 + $0x4] sm:$0xf]
        %v2168 = vld [vmem:[#allocation20 + $0x8] sm:$0xf]
        %v2169 = vld [vmem:[#allocation20 + $0xc] sm:$0xf]
        %v2170 = vld [vmem:[#allocation20 + $0x10] sm:$0xf]
        %v2171 = vld [vmem:[#allocation20 + $0x14] sm:$0xf]
        %v2172 = vld [vmem:[#allocation20 + $0x18] sm:$0xf]
        %v2173 = vld [vmem:[#allocation20 + $0x1c] sm:$0xf]
        %v2174 = vld [vmem:[#allocation20 + $0x20] sm:$0xf]
        %v2175 = vld [vmem:[#allocation20 + $0x24] sm:$0xf]
        %v2176 = vld [vmem:[#allocation20 + $0x28] sm:$0xf]
        %v2177 = vld [vmem:[#allocation20 + $0x2c] sm:$0xf]
        %v2178 = vld [vmem:[#allocation20 + $0x30] sm:$0xf]
        %v2179 = vld [vmem:[#allocation20 + $0x34] sm:$0xf]
        %v2180 = vld [vmem:[#allocation20 + $0x38] sm:$0xf]
        %v2181 = vld [vmem:[#allocation20 + $0x3c] sm:$0xf]
        %v2182 = vld [vmem:[#allocation22] sm:$0x1]
        %v2184 = vlaneseq
        %v2185 = vshrl.u32 %v2184, 7
        %v2186 = vsub.s32 0, %v2185
        %v2187 = vrot.slane %v2182, %v2186
        %v2205 = vunpack.c.l.b16 %v2166
        %v2206 = vunpack.c.l.b16 %v2167
        %v2207 = vunpack.c.l.b16 %v2168
        %v2208 = vunpack.c.l.b16 %v2169
        %v2209 = vunpack.c.l.b16 %v2170
        %v2210 = vunpack.c.l.b16 %v2171
        %v2211 = vunpack.c.l.b16 %v2172
        %v2212 = vunpack.c.l.b16 %v2173
        %v2213 = vunpack.c.l.b16 %v2174
        %v2214 = vunpack.c.l.b16 %v2175
        %v2215 = vunpack.c.l.b16 %v2176
        %v2216 = vunpack.c.l.b16 %v2177
        %v2217 = vunpack.c.l.b16 %v2178
        %v2218 = vunpack.c.l.b16 %v2179
        %v2219 = vunpack.c.l.b16 %v2180
        %v2220 = vunpack.c.l.b16 %v2181
        %v2221 = vpack.c.b16 %v2206, %v2205
        %v2222 = vpack.c.b16 %v2208, %v2207
        %v2223 = vpack.c.b16 %v2210, %v2209
        %v2224 = vpack.c.b16 %v2212, %v2211
        %v2225 = vpack.c.b16 %v2214, %v2213
        %v2226 = vpack.c.b16 %v2216, %v2215
        %v2227 = vpack.c.b16 %v2218, %v2217
        %v2228 = vpack.c.b16 %v2220, %v2219
        %2237 = vmatprep.subr.bf16.mxu0 0
        %2238 = vmatpush1.bf16.msra.mxu0 %v2221
        %2239 = vmatprep.subr.bf16.mxu0 0
        %2240 = vmatpush1.bf16.msra.mxu0 %v2222
        %2241 = vmatprep.subr.bf16.mxu0 0
        %2242 = vmatpush1.bf16.msra.mxu0 %v2223
        %2243 = vmatprep.subr.bf16.mxu0 0
        %2244 = vmatpush1.bf16.msra.mxu0 %v2224
        %2245 = vmatprep.subr.bf16.mxu0 0
        %2246 = vmatpush1.bf16.msra.mxu0 %v2225
        %2247 = vmatprep.subr.bf16.mxu0 0
        %2248 = vmatpush1.bf16.msra.mxu0 %v2226
        %2249 = vmatprep.subr.bf16.mxu0 0
        %2250 = vmatpush1.bf16.msra.mxu0 %v2227
        %2251 = vmatprep.subr.bf16.mxu0 0
        %2252 = vmatpush1.bf16.msra.mxu0 %v2228
        %2253 = vmatprep.subr.bf16.mxu0 0
        %2254 = vmatpush1.bf16.msra.mxu0 0
        %2255 = vmatprep.subr.bf16.mxu0 0
        %2256 = vmatpush1.bf16.msra.mxu0 0
        %2257 = vmatprep.subr.bf16.mxu0 0
        %2258 = vmatpush1.bf16.msra.mxu0 0
        %2259 = vmatprep.subr.bf16.mxu0 0
        %2260 = vmatpush1.bf16.msra.mxu0 0
        %2261 = vmatprep.subr.bf16.mxu0 0
        %2262 = vmatpush1.bf16.msra.mxu0 0
        %2263 = vmatprep.subr.bf16.mxu0 0
        %2264 = vmatpush1.bf16.msra.mxu0 0
        %2265 = vmatprep.subr.bf16.mxu0 0
        %2266 = vmatpush1.bf16.msra.mxu0 0
        %2267 = vmatprep.subr.bf16.mxu0 0
        %2268 = vmatpush1.bf16.msra.mxu0 0
        %2269 = vmatprep.mubr.bf16.mxu0 0
        %2270 = vmatmul.mubr.bf16.gmra.mrb[0].mxu0 %v2165
        %v2271 = vpop.f32.mrb[0].mxu0
        %v2272 = vadd.f32 %v2187, %v2271
        %v2273 = vpop.f32.mrb[0].mxu0
        %v2274 = vpop.f32.mrb[0].mxu0
        %v2275 = vpop.f32.mrb[0].mxu0
        %2276 = vdwg.mxu0
        %v2277 = vadd.f32 %v2059, %v2272
        %2278 = vst.msk [vmem:[%s615] sm:$0xff] %vm620, %v2277
        %s2279 = sand.u32 %s322, 1
        %s2280 = scalar_lea.sflag [#allocation4], %s2279
        %s2281 = sand.u32 %s322, 1
        %s2282 = smul.addr %s2281, 8
        %s2283 = scalar_lea.vmem [#allocation23], %s2282
        // Predicated region
        $region125: #{tpu_custom_call.1} parent=71 // pred_check
          %p2284 = pneg %p332
        $region126: #{tpu_custom_call.1} parent=71 // pred_check_branch
          %2286 = sbr.rel (%p2284) target = $region128
        $region127: #{tpu_custom_call.1} parent=71 // pred_region
          %s2288 = ssub.s32 128, 128
          %2289 = vsyncadd %s2280, %s2288
          %s2290 = smul.addr %s36, 128
          %s2291 = scalar_lea.hbm %s13, %s2290
          %s2293 = sshll.u32 %s2283, 4
          %s2294 = int_to_ptr.vmem [resolvable:$true] %s2293
          %2296 = dma.vmem_to_hbm [thread:$0]  %s2294, 128, %s2291, %s2280
        $region128: #{tpu_custom_call.1} parent=71 // pred_fallthru
          _
      $region72: #{tpu_custom_call.1} parent=5 // pred_fallthru
        _
      %p2297 = scmp.le.s32.totalorder 2, %s31
      // Predicated region
      $region129: #{tpu_custom_call.1} parent=5 // pred_check
        %p2298 = pneg %p2297
      $region130: #{tpu_custom_call.1} parent=5 // pred_check_branch
        %2300 = sbr.rel (%p2298) target = $region132
      $region131: #{tpu_custom_call.1} parent=5 // pred_region
        %s2301 = ssub.s32 %s31, 2
        // Predicated region
        $region133: #{tpu_custom_call.1} parent=131 // pred_check
          %p2302 = pneg %p338
        $region134: #{tpu_custom_call.1} parent=131 // pred_check_branch
          %2304 = sbr.rel (%p2302) target = $region136
        $region135: #{tpu_custom_call.1} parent=131 // pred_region
          %s2305 = sand.u32 %s323, 1
          %s2306 = scalar_lea.sflag [#allocation4], %s2305
          %s2307 = sand.u32 %s323, 1
          %s2308 = smul.addr %s2307, 8
          %s2309 = scalar_lea.vmem [#allocation23], %s2308
          %2310 = dma.done %s2306, 128
        $region136: #{tpu_custom_call.1} parent=131 // pred_fallthru
          _
      $region132: #{tpu_custom_call.1} parent=5 // pred_fallthru
        _
    $region6: #{tpu_custom_call.1} parent=1 // loop_footer
      %s35 = sadd.s32 1, %s31
    $region7: #{tpu_custom_call.1} parent=1 // loop_footer_branch
      %30 = sbr.rel target = $region3
    $region8: #{tpu_custom_call.1} parent=1 // loop_exit
      _
    %2311 = vsyncpa [#allocation3], 1
    %s2312 = scalar_lea.sflag [#allocation3], 1
    %2313 = vsyncpa %s2312, 1
    %2314 = vsyncpa [#allocation6], 1
    %2315 = vsyncpa [#allocation9], 1
    %2316 = vsyncpa [#allocation12], 1
    %2317 = vsyncpa [#allocation15], 1
    %2318 = vsyncpa [#allocation18], 1
    %2319 = vsyncpa [#allocation21], 1
    %2320 = vsyncpa [#allocation4], 1
    %s2321 = scalar_lea.sflag [#allocation4], 1
    %2322 = vsyncpa %s2321, 1

</llo_original>
